<compile_context>
chip_gen: v6e
topology: v6e:2x2x1
jax: 0.10.0
libtpu: 0.0.40
codegen_flags: <defaults>
</compile_context>

<pallas_src>
import jax
import jax.numpy as jnp
from jax.experimental import pallas as pl
from jax.experimental.pallas import tpu as pltpu


def _round_up(x, m):
    return ((x + m - 1) // m) * m


def _pad2(a, rows, cols):
    return jnp.pad(a, ((0, rows - a.shape[0]), (0, cols - a.shape[1])))


def _make_kernel(n_point, n_cloud, n_cls_rest, bt, n, n_w, use_onehot):
    """One grid step: `bt` whole batches folded onto the lane axis (bt*n points)."""
    f32, bf16 = jnp.float32, jnp.bfloat16

    def kernel(*refs):
        feat_ref, col0_ref = refs[0], refs[1]
        idx = 2
        onehot_ref = None
        if use_onehot:
            onehot_ref = refs[idx]
            idx += 1
        w_refs = refs[idx:idx + n_w]
        b_ref = refs[idx + n_w]
        out_ref = refs[idx + n_w + 1]

        b_all = b_ref[...]                                    # (bmax, Lb) f32

        def bias_col(i, co):                                  # (co, 1) f32
            return b_all[:co, i:i + 1]

        def hidden(w_ref, x_bf16, bi):
            """Conv1d(k=1) + folded BN + ReLU, bf16 epilogue on the f32 MXU acc."""
            co = w_ref.shape[0]
            acc = jnp.dot(w_ref[...], x_bf16, preferred_element_type=f32)
            return jnp.maximum(
                acc.astype(bf16) + bias_col(bi, co).astype(bf16), 0.0)

        # ---- point_features branch ----
        h = feat_ref[...]                                     # (cin_pad, bt*n) bf16
        li = bi = 0
        for _ in range(n_point):
            h = hidden(w_refs[li], h, bi)
            li += 1
            bi += 1
        pf = h                                                # (pf_pad, bt*n) bf16

        # ---- cloud_features branch ----
        g = pf
        for j in range(n_cloud):
            w_ref = w_refs[li]
            co = w_ref.shape[0]
            acc = jnp.dot(w_ref[...], g, preferred_element_type=f32)
            if j + 1 < n_cloud:
                g = jnp.maximum(
                    acc.astype(bf16) + bias_col(bi, co).astype(bf16), 0.0)
            else:
                # last cloud layer only feeds the max-reduce: keep f32 epilogue
                g = jnp.maximum(acc + bias_col(bi, co), 0.0)
            li += 1
            bi += 1
        cc = g.shape[0]

        # Per-batch global max over the point axis (segments of n lanes).
        if bt == 1:
            cf = jnp.max(g, axis=-1, keepdims=True)           # (cc, 1) f32
        else:
            cf = jnp.max(g.reshape(cc, bt, n), axis=-1)       # (cc, bt) f32

        # ---- classifier, first SharedMLP layer ----
        # concat([one_hot, point_feat, cloud_feat]) realized as split matmuls;
        # the one-hot part (+ its bias) was precomputed into col0 in the wrapper.
        w_pt, w_cl = w_refs[li], w_refs[li + 1]
        li += 2
        zpt = jnp.dot(w_pt[...], pf, preferred_element_type=f32)    # (c1, bt*n)
        col = jnp.dot(w_cl[...], cf.astype(bf16),
                      preferred_element_type=f32) + col0_ref[0]     # (c1, bt) f32
        if use_onehot:
            # exact broadcast of each batch column over its n-lane segment (MXU)
            add = jnp.dot(col, onehot_ref[...], preferred_element_type=f32)
        else:
            add = col                                                # lane broadcast
        z = jnp.maximum((zpt + add).astype(bf16), 0.0)

        # ---- remaining classifier layers (Dropout == identity) ----
        for _ in range(n_cls_rest):
            z = hidden(w_refs[li], z, bi)
            li += 1
            bi += 1

        # ---- final Conv1d (logits, no activation) ----
        wf = w_refs[li]
        of = wf.shape[0]
        out_ref[...] = (jnp.dot(wf[...], z, preferred_element_type=f32)
                        + bias_col(bi, of))

    return kernel


def instance_segmentation_forward(features, one_hot_vectors, params):
    """features: (B, C_in, N) f32; one_hot_vectors: (B, num_classes) f32."""
    point, cloud, (W1_oh, W1_pt, W1_cl, b1), cls_rest, (Wf, bfin) = params
    B, C_in, N = features.shape
    assert N % 128 == 0, "point count must be a multiple of 128"
    assert len(point) >= 1 and len(cloud) >= 1

    bf16, f32 = jnp.bfloat16, jnp.float32
    out_ch = Wf.shape[0]
    out_pad = _round_up(out_ch, 8)        # f32 logits: one 8-sublane tile
    cin_pad = _round_up(C_in, 16)         # bf16 features: 16-row packing

    # ---- pad weights to per-layer real widths (round16(out), round16(in)) ----
    ws, bs = [], []                       # weights (kernel order); (bias, co_pad)
    ci_pad = cin_pad
    for W, b in point:
        co_pad = _round_up(W.shape[0], 16)
        ws.append(_pad2(W, co_pad, ci_pad))
        bs.append((b.reshape(-1), co_pad))
        ci_pad = co_pad
    pf_pad = ci_pad
    for W, b in cloud:
        co_pad = _round_up(W.shape[0], 16)
        ws.append(_pad2(W, co_pad, ci_pad))
        bs.append((b.reshape(-1), co_pad))
        ci_pad = co_pad
    cc_pad = ci_pad
    c1_pad = _round_up(W1_pt.shape[0], 16)
    ws.append(_pad2(W1_pt, c1_pad, pf_pad))
    ws.append(_pad2(W1_cl, c1_pad, cc_pad))
    ci_pad = c1_pad
    cls_pads = []
    for W, b in cls_rest:
        co_pad = _round_up(W.shape[0], 16)
        ws.append(_pad2(W, co_pad, ci_pad))
        bs.append((b.reshape(-1), co_pad))
        cls_pads.append(co_pad)
        ci_pad = co_pad
    ws.append(_pad2(Wf, out_pad, ci_pad))
    bs.append((bfin.reshape(-1), out_pad))
    if not cls_pads:
        cls_pads = [c1_pad]

    w_list = [w.astype(bf16) for w in ws]
    n_w = len(w_list)
    bmax = max(co for _, co in bs)
    b_slab = jnp.stack(
        [jnp.pad(b.astype(f32), (0, bmax - b.shape[0])) for b, _ in bs],
        axis=1)                                               # (bmax, Lb) f32

    # ---- choose bt: batches folded onto the lane axis per grid step ----
    # conservative per-lane VMEM estimate (bytes per folded lane, ~peak live set)
    per_lane = (4 * cin_pad + 8 * out_pad         # double-buffered I/O tiles
                + 2 * pf_pad + 4 * cc_pad         # pf (bf16), g (f32)
                + 12 * c1_pad                     # zpt f32 + add f32 + z bf16
                + 6 * max(cls_pads))              # cls acc f32 + act bf16
    budget = 24 * 2 ** 20                         # safe on v5e / v6e / v7x
    max_lanes = max(N, min(8192, (budget // per_lane) // 128 * 128))
    bt = 1
    for cand in range(1, B + 1):
        if B % cand != 0 or cand * N > max_lanes:
            continue
        if B >= 2 and B // cand < 2:              # keep >=2 grid steps (megacore)
            continue
        bt = cand
    n_tiles = B // bt
    use_onehot = bt > 1

    # ---- batch-constant classifier column: W_oh @ one_hot + b1 (per batch) ----
    col0 = (jnp.einsum('oc,bc->ob', W1_oh, one_hot_vectors.astype(f32))
            + b1.reshape(-1, 1))                              # (c1, B) f32
    col0 = _pad2(col0, c1_pad, B)
    col0 = col0.reshape(c1_pad, n_tiles, bt).transpose(1, 0, 2)   # (nT, c1_pad, bt)

    # ---- fold batch into the lane (points) axis ----
    feat = jnp.pad(features, ((0, 0), (0, cin_pad - C_in), (0, 0)))
    feat = jnp.transpose(feat, (1, 0, 2)).reshape(cin_pad, B * N).astype(bf16)

    in_arrays = [feat, col0]
    in_specs = [
        pl.BlockSpec((cin_pad, bt * N), lambda i: (0, i)),        # folded features
        pl.BlockSpec((1, c1_pad, bt), lambda i: (i, 0, 0)),       # col0 per tile
    ]
    if use_onehot:
        # segment one-hot (f32 so the in-kernel broadcast-matmul is exact)
        seg = (jnp.arange(bt)[:, None]
               == (jnp.arange(bt * N)[None, :] // N)).astype(f32)
        in_arrays.append(seg)
        in_specs.append(pl.BlockSpec((bt, bt * N), lambda i: (0, 0)))
    for w in w_list:                                              # per-layer weights
        in_arrays.append(w)
        in_specs.append(pl.BlockSpec(w.shape, lambda i: (0, 0)))
    in_arrays.append(b_slab)                                      # bias slab
    in_specs.append(pl.BlockSpec(b_slab.shape, lambda i: (0, 0)))

    kernel = _make_kernel(len(point), len(cloud), len(cls_rest),
                          bt, N, n_w, use_onehot)

    # real (unpadded) FLOPs: per-point matmuls + per-batch cloud-column matmuls
    per_point = (sum(W.size for W, _ in point) + sum(W.size for W, _ in cloud)
                 + W1_pt.size + sum(W.size for W, _ in cls_rest) + Wf.size)
    flops = 2 * B * N * per_point + 2 * B * (W1_cl.size + W1_oh.size)
    bytes_accessed = (feat.size * 2 + sum(w.size * 2 for w in w_list)
                      + b_slab.size * 4 + col0.size * 4 + out_pad * B * N * 4)
    if use_onehot:
        bytes_accessed += bt * bt * N * 4
    cost = pl.CostEstimate(flops=int(flops), transcendentals=0,
                           bytes_accessed=int(bytes_accessed))

    vmem_limit = int(min(64 * 2 ** 20,
                         max(32 * 2 ** 20, 2 * per_lane * bt * N + 4 * 2 ** 20)))

    out = pl.pallas_call(
        kernel,
        out_shape=jax.ShapeDtypeStruct((out_pad, B * N), f32),
        grid_spec=pltpu.PrefetchScalarGridSpec(
            num_scalar_prefetch=0,
            grid=(n_tiles,),
            in_specs=in_specs,
            out_specs=pl.BlockSpec((out_pad, bt * N), lambda i: (0, i)),
        ),
        compiler_params=pltpu.CompilerParams(
            dimension_semantics=("parallel",),
            vmem_limit_bytes=vmem_limit),
        cost_estimate=cost,
    )(*in_arrays)

    # Unfold: (out_pad, B*N) -> (B, out_ch, N)
    return out[:out_ch].reshape(out_ch, B, N).transpose(1, 0, 2)


def forward_reference(features, one_hot_vectors, params):
    """Pure-JAX reference mirroring the kernel's bf16/f32 mixed precision."""
    point, cloud, (W1_oh, W1_pt, W1_cl, b1), cls_rest, (Wf, bfin) = params
    bf16, f32 = jnp.bfloat16, jnp.float32
    B = features.shape[0]
    nc = one_hot_vectors.shape[1]

    def mm(W, x):   # bf16 operands, f32 accumulation (matches the kernel)
        return jnp.einsum('oc,bcn->bon', W.astype(bf16), x.astype(bf16),
                          preferred_element_type=f32)

    def relu_bf16(acc, b):  # bf16 epilogue, as in the kernel's hidden layers
        return jnp.maximum(acc.astype(bf16) + b.astype(bf16)[None], 0.0)

    h = features
    for W, b in point:
        h = relu_bf16(mm(W, h), b)
    pf = h
    g = pf
    for i, (W, b) in enumerate(cloud):
        acc = mm(W, g)
        if i + 1 < len(cloud):
            g = relu_bf16(acc, b)
        else:
            g = jnp.maximum(acc + b[None], 0.0)        # f32 epilogue (kernel mirror)
    cf = jnp.max(g, axis=-1, keepdims=True)            # (B, cc, 1) f32
    oh = one_hot_vectors.reshape(B, nc, 1).astype(f32)
    col0 = jnp.einsum('oc,bcn->bon', W1_oh, oh) + b1[None]        # f32 (wrapper)
    col = jnp.einsum('oc,bcn->bon', W1_cl.astype(bf16), cf.astype(bf16),
                     preferred_element_type=f32) + col0           # (B, c1, 1)
    z = jnp.maximum((mm(W1_pt, pf) + col).astype(bf16), 0.0)
    for W, b in cls_rest:
        z = relu_bf16(mm(W, z), b)
    return mm(Wf, z) + bfin[None]


def init_params(key, in_channels, num_classes, point_channels, cloud_channels,
                cls_channels, out_channels=2):
    """Deterministic synthetic init; BN (eval, default stats) pre-folded into conv."""
    keys = iter(jax.random.split(key, 128))

    def lin(cin, cout):
        W = jax.random.normal(next(keys), (cout, cin), jnp.float32) / jnp.sqrt(
            jnp.float32(cin))
        b = jax.random.normal(next(keys), (cout, 1), jnp.float32) * 0.01
        return W, b

    c = in_channels
    point = []
    for co in point_channels:
        point.append(lin(c, co))
        c = co
    cp = c

    cloud = []
    for co in cloud_channels:
        cloud.append(lin(c, co))
        c = co
    cc = c

    # Classifier first layer takes concat([one_hot, point_feat, cloud_feat]).
    c1 = cls_channels[0]
    W1, b1 = lin(num_classes + cp + cc, c1)
    W1_oh = W1[:, :num_classes]
    W1_pt = W1[:, num_classes:num_classes + cp]
    W1_cl = W1[:, num_classes + cp:]

    cls_rest = []
    c = c1
    for co in cls_channels[1:]:
        cls_rest.append(lin(c, co))
        c = co

    final = lin(c, out_channels)
    return point, cloud, (W1_oh, W1_pt, W1_cl, b1), cls_rest, final


if __name__ == "__main__":
    # Configuration consistent with the module:
    #   extra_feature_channels=1 -> in_channels=4, num_classes=3,
    #   point_blocks -> [16, 32], cloud_blocks -> [64],
    #   classifier [512,256,128,128]*width_multiplier(0.25) = [128,64,32,32], out=2
    B, N = 2, 128
    num_classes = 3
    extra_feature_channels = 1
    in_channels = extra_feature_channels + 3
    point_channels = (16, 32)
    cloud_channels = (64,)
    cls_channels = (128, 64, 32, 32)

    key = jax.random.PRNGKey(0)
    k_feat, k_cls, k_par = jax.random.split(key, 3)

    features = jax.random.normal(k_feat, (B, in_channels, N), jnp.float32)
    class_ids = jax.random.randint(k_cls, (B,), 0, num_classes)
    one_hot_vectors = jax.nn.one_hot(class_ids, num_classes, dtype=jnp.float32)

    params = init_params(k_par, in_channels, num_classes, point_channels,
                         cloud_channels, cls_channels, out_channels=2)

    out = instance_segmentation_forward(features, one_hot_vectors, params)
    out = jax.block_until_ready(out)

    ref = forward_reference(features, one_hot_vectors, params)
    assert out.shape == (B, 2, N), out.shape
    # bf16 matmuls with f32 accumulation on both sides; loose-but-meaningful tol.
    assert jnp.allclose(out, ref, rtol=2e-2, atol=2e-2), "mismatch vs reference"

    print("KERNEL_OK")
</pallas_src>

<mosaic_0001>
module attributes {stable_mosaic.version = 11 : i64} {
  func.func @kernel(%arg0: i32, %arg1: memref<16x128xbf16, #tpu.memory_space<vmem>>, %arg2: memref<1x128x1xf32, #tpu.memory_space<vmem>>, %arg3: memref<16x16xbf16, #tpu.memory_space<vmem>>, %arg4: memref<32x16xbf16, #tpu.memory_space<vmem>>, %arg5: memref<64x32xbf16, #tpu.memory_space<vmem>>, %arg6: memref<128x32xbf16, #tpu.memory_space<vmem>>, %arg7: memref<128x64xbf16, #tpu.memory_space<vmem>>, %arg8: memref<64x128xbf16, #tpu.memory_space<vmem>>, %arg9: memref<32x64xbf16, #tpu.memory_space<vmem>>, %arg10: memref<32x32xbf16, #tpu.memory_space<vmem>>, %arg11: memref<8x32xbf16, #tpu.memory_space<vmem>>, %arg12: memref<64x7xf32, #tpu.memory_space<vmem>>, %arg13: memref<8x128xf32, #tpu.memory_space<vmem>>) attributes {dimension_semantics = [#tpu.dimension_semantics<parallel>], iteration_bounds = array<i64: 2>, scalar_prefetch = 0 : i64, scratch_operands = 0 : i64, tpu.core_type = #tpu.core_type<tc>, window_params = [{transform_indices = @transform_0, window_bounds = array<i64: 16, 128>}, {transform_indices = @transform_1, window_bounds = array<i64: 1, 128, 1>}, {pipeline_mode = #tpu.pipeline_mode<synchronous>, transform_indices = @transform_2, window_bounds = array<i64: 16, 16>}, {pipeline_mode = #tpu.pipeline_mode<synchronous>, transform_indices = @transform_3, window_bounds = array<i64: 32, 16>}, {pipeline_mode = #tpu.pipeline_mode<synchronous>, transform_indices = @transform_4, window_bounds = array<i64: 64, 32>}, {pipeline_mode = #tpu.pipeline_mode<synchronous>, transform_indices = @transform_5, window_bounds = array<i64: 128, 32>}, {pipeline_mode = #tpu.pipeline_mode<synchronous>, transform_indices = @transform_6, window_bounds = array<i64: 128, 64>}, {pipeline_mode = #tpu.pipeline_mode<synchronous>, transform_indices = @transform_7, window_bounds = array<i64: 64, 128>}, {pipeline_mode = #tpu.pipeline_mode<synchronous>, transform_indices = @transform_8, window_bounds = array<i64: 32, 64>}, {pipeline_mode = #tpu.pipeline_mode<synchronous>, transform_indices = @transform_9, window_bounds = array<i64: 32, 32>}, {pipeline_mode = #tpu.pipeline_mode<synchronous>, transform_indices = @transform_10, window_bounds = array<i64: 8, 32>}, {pipeline_mode = #tpu.pipeline_mode<synchronous>, transform_indices = @transform_11, window_bounds = array<i64: 64, 7>}, {transform_indices = @transform_12, window_bounds = array<i64: 8, 128>}]} {
    %c0 = arith.constant 0 : index
    %c0_0 = arith.constant 0 : index
    %0 = vector.load %arg12[%c0, %c0_0] : memref<64x7xf32, #tpu.memory_space<vmem>>, vector<64x7xf32>
    %c0_1 = arith.constant 0 : index
    %c0_2 = arith.constant 0 : index
    %1 = vector.load %arg1[%c0_1, %c0_2] : memref<16x128xbf16, #tpu.memory_space<vmem>>, vector<16x128xbf16>
    %c0_3 = arith.constant 0 : index
    %c0_4 = arith.constant 0 : index
    %2 = vector.load %arg3[%c0_3, %c0_4] : memref<16x16xbf16, #tpu.memory_space<vmem>>, vector<16x16xbf16>
    %cst = arith.constant dense<0.000000e+00> : vector<16x128xf32>
    %3 = tpu.matmul %2, %1, %cst {dimension_numbers = #tpu.dot_dimension_numbers<[1], [0], [0], [1], [0, 0, 1, 1], [], []>} : vector<16x16xbf16>, vector<16x128xbf16>, vector<16x128xf32> -> vector<16x128xf32>
    %4 = arith.truncf %3 : vector<16x128xf32> to vector<16x128xbf16>
    %5 = vector.extract_strided_slice %0 {offsets = [0, 0], sizes = [16, 1], strides = [1, 1]} : vector<64x7xf32> to vector<16x1xf32>
    %6 = arith.truncf %5 : vector<16x1xf32> to vector<16x1xbf16>
    %7 = vector.broadcast %6 : vector<16x1xbf16> to vector<16x128xbf16>
    %8 = arith.addf %4, %7 : vector<16x128xbf16>
    %cst_5 = arith.constant 0.000000e+00 : bf16
    %9 = vector.broadcast %cst_5 : bf16 to vector<16x128xbf16>
    %10 = arith.maximumf %8, %9 : vector<16x128xbf16>
    %c0_6 = arith.constant 0 : index
    %c0_7 = arith.constant 0 : index
    %11 = vector.load %arg4[%c0_6, %c0_7] : memref<32x16xbf16, #tpu.memory_space<vmem>>, vector<32x16xbf16>
    %cst_8 = arith.constant dense<0.000000e+00> : vector<32x128xf32>
    %12 = tpu.matmul %11, %10, %cst_8 {dimension_numbers = #tpu.dot_dimension_numbers<[1], [0], [0], [1], [0, 0, 1, 1], [], []>} : vector<32x16xbf16>, vector<16x128xbf16>, vector<32x128xf32> -> vector<32x128xf32>
    %13 = arith.truncf %12 : vector<32x128xf32> to vector<32x128xbf16>
    %14 = vector.extract_strided_slice %0 {offsets = [0, 1], sizes = [32, 1], strides = [1, 1]} : vector<64x7xf32> to vector<32x1xf32>
    %15 = arith.truncf %14 : vector<32x1xf32> to vector<32x1xbf16>
    %16 = vector.broadcast %15 : vector<32x1xbf16> to vector<32x128xbf16>
    %17 = arith.addf %13, %16 : vector<32x128xbf16>
    %cst_9 = arith.constant 0.000000e+00 : bf16
    %18 = vector.broadcast %cst_9 : bf16 to vector<32x128xbf16>
    %19 = arith.maximumf %17, %18 : vector<32x128xbf16>
    %c0_10 = arith.constant 0 : index
    %c0_11 = arith.constant 0 : index
    %20 = vector.load %arg5[%c0_10, %c0_11] : memref<64x32xbf16, #tpu.memory_space<vmem>>, vector<64x32xbf16>
    %cst_12 = arith.constant dense<0.000000e+00> : vector<64x128xf32>
    %21 = tpu.matmul %20, %19, %cst_12 {dimension_numbers = #tpu.dot_dimension_numbers<[1], [0], [0], [1], [0, 0, 1, 1], [], []>} : vector<64x32xbf16>, vector<32x128xbf16>, vector<64x128xf32> -> vector<64x128xf32>
    %22 = vector.extract_strided_slice %0 {offsets = [0, 2], sizes = [64, 1], strides = [1, 1]} : vector<64x7xf32> to vector<64x1xf32>
    %23 = vector.broadcast %22 : vector<64x1xf32> to vector<64x128xf32>
    %24 = arith.addf %21, %23 : vector<64x128xf32>
    %cst_13 = arith.constant 0.000000e+00 : f32
    %25 = vector.broadcast %cst_13 : f32 to vector<64x128xf32>
    %26 = arith.maximumf %24, %25 : vector<64x128xf32>
    %cst_14 = arith.constant dense<0xFF800000> : vector<64xf32>
    %27 = vector.multi_reduction <maximumf>, %26, %cst_14 [1] : vector<64x128xf32> to vector<64xf32>
    %28 = vector.shape_cast %27 : vector<64xf32> to vector<64x1xf32>
    %c0_15 = arith.constant 0 : index
    %c0_16 = arith.constant 0 : index
    %29 = vector.load %arg6[%c0_15, %c0_16] : memref<128x32xbf16, #tpu.memory_space<vmem>>, vector<128x32xbf16>
    %cst_17 = arith.constant dense<0.000000e+00> : vector<128x128xf32>
    %30 = tpu.matmul %29, %19, %cst_17 {dimension_numbers = #tpu.dot_dimension_numbers<[1], [0], [0], [1], [0, 0, 1, 1], [], []>} : vector<128x32xbf16>, vector<32x128xbf16>, vector<128x128xf32> -> vector<128x128xf32>
    %c0_18 = arith.constant 0 : index
    %c0_19 = arith.constant 0 : index
    %31 = vector.load %arg7[%c0_18, %c0_19] : memref<128x64xbf16, #tpu.memory_space<vmem>>, vector<128x64xbf16>
    %32 = arith.truncf %28 : vector<64x1xf32> to vector<64x1xbf16>
    %cst_20 = arith.constant dense<0.000000e+00> : vector<128x1xf32>
    %33 = tpu.matmul %31, %32, %cst_20 {dimension_numbers = #tpu.dot_dimension_numbers<[1], [0], [0], [1], [0, 0, 1, 1], [], []>} : vector<128x64xbf16>, vector<64x1xbf16>, vector<128x1xf32> -> vector<128x1xf32>
    %c0_21 = arith.constant 0 : index
    %c0_22 = arith.constant 0 : index
    %c0_23 = arith.constant 0 : index
    %34 = vector.load %arg2[%c0_21, %c0_22, %c0_23] : memref<1x128x1xf32, #tpu.memory_space<vmem>>, vector<1x128x1xf32>
    %35 = vector.shape_cast %34 : vector<1x128x1xf32> to vector<128x1xf32>
    %36 = arith.addf %33, %35 : vector<128x1xf32>
    %37 = vector.broadcast %36 : vector<128x1xf32> to vector<128x128xf32>
    %38 = arith.addf %30, %37 : vector<128x128xf32>
    %39 = arith.truncf %38 : vector<128x128xf32> to vector<128x128xbf16>
    %cst_24 = arith.constant 0.000000e+00 : bf16
    %40 = vector.broadcast %cst_24 : bf16 to vector<128x128xbf16>
    %41 = arith.maximumf %39, %40 : vector<128x128xbf16>
    %c0_25 = arith.constant 0 : index
    %c0_26 = arith.constant 0 : index
    %42 = vector.load %arg8[%c0_25, %c0_26] : memref<64x128xbf16, #tpu.memory_space<vmem>>, vector<64x128xbf16>
    %cst_27 = arith.constant dense<0.000000e+00> : vector<64x128xf32>
    %43 = tpu.matmul %42, %41, %cst_27 {dimension_numbers = #tpu.dot_dimension_numbers<[1], [0], [0], [1], [0, 0, 1, 1], [], []>} : vector<64x128xbf16>, vector<128x128xbf16>, vector<64x128xf32> -> vector<64x128xf32>
    %44 = arith.truncf %43 : vector<64x128xf32> to vector<64x128xbf16>
    %45 = vector.extract_strided_slice %0 {offsets = [0, 3], sizes = [64, 1], strides = [1, 1]} : vector<64x7xf32> to vector<64x1xf32>
    %46 = arith.truncf %45 : vector<64x1xf32> to vector<64x1xbf16>
    %47 = vector.broadcast %46 : vector<64x1xbf16> to vector<64x128xbf16>
    %48 = arith.addf %44, %47 : vector<64x128xbf16>
    %cst_28 = arith.constant 0.000000e+00 : bf16
    %49 = vector.broadcast %cst_28 : bf16 to vector<64x128xbf16>
    %50 = arith.maximumf %48, %49 : vector<64x128xbf16>
    %c0_29 = arith.constant 0 : index
    %c0_30 = arith.constant 0 : index
    %51 = vector.load %arg9[%c0_29, %c0_30] : memref<32x64xbf16, #tpu.memory_space<vmem>>, vector<32x64xbf16>
    %cst_31 = arith.constant dense<0.000000e+00> : vector<32x128xf32>
    %52 = tpu.matmul %51, %50, %cst_31 {dimension_numbers = #tpu.dot_dimension_numbers<[1], [0], [0], [1], [0, 0, 1, 1], [], []>} : vector<32x64xbf16>, vector<64x128xbf16>, vector<32x128xf32> -> vector<32x128xf32>
    %53 = arith.truncf %52 : vector<32x128xf32> to vector<32x128xbf16>
    %54 = vector.extract_strided_slice %0 {offsets = [0, 4], sizes = [32, 1], strides = [1, 1]} : vector<64x7xf32> to vector<32x1xf32>
    %55 = arith.truncf %54 : vector<32x1xf32> to vector<32x1xbf16>
    %56 = vector.broadcast %55 : vector<32x1xbf16> to vector<32x128xbf16>
    %57 = arith.addf %53, %56 : vector<32x128xbf16>
    %cst_32 = arith.constant 0.000000e+00 : bf16
    %58 = vector.broadcast %cst_32 : bf16 to vector<32x128xbf16>
    %59 = arith.maximumf %57, %58 : vector<32x128xbf16>
    %c0_33 = arith.constant 0 : index
    %c0_34 = arith.constant 0 : index
    %60 = vector.load %arg10[%c0_33, %c0_34] : memref<32x32xbf16, #tpu.memory_space<vmem>>, vector<32x32xbf16>
    %cst_35 = arith.constant dense<0.000000e+00> : vector<32x128xf32>
    %61 = tpu.matmul %60, %59, %cst_35 {dimension_numbers = #tpu.dot_dimension_numbers<[1], [0], [0], [1], [0, 0, 1, 1], [], []>} : vector<32x32xbf16>, vector<32x128xbf16>, vector<32x128xf32> -> vector<32x128xf32>
    %62 = arith.truncf %61 : vector<32x128xf32> to vector<32x128xbf16>
    %63 = vector.extract_strided_slice %0 {offsets = [0, 5], sizes = [32, 1], strides = [1, 1]} : vector<64x7xf32> to vector<32x1xf32>
    %64 = arith.truncf %63 : vector<32x1xf32> to vector<32x1xbf16>
    %65 = vector.broadcast %64 : vector<32x1xbf16> to vector<32x128xbf16>
    %66 = arith.addf %62, %65 : vector<32x128xbf16>
    %cst_36 = arith.constant 0.000000e+00 : bf16
    %67 = vector.broadcast %cst_36 : bf16 to vector<32x128xbf16>
    %68 = arith.maximumf %66, %67 : vector<32x128xbf16>
    %c0_37 = arith.constant 0 : index
    %c0_38 = arith.constant 0 : index
    %69 = vector.load %arg11[%c0_37, %c0_38] : memref<8x32xbf16, #tpu.memory_space<vmem>>, vector<8x32xbf16>
    %cst_39 = arith.constant dense<0.000000e+00> : vector<8x128xf32>
    %70 = tpu.matmul %69, %68, %cst_39 {dimension_numbers = #tpu.dot_dimension_numbers<[1], [0], [0], [1], [0, 0, 1, 1], [], []>} : vector<8x32xbf16>, vector<32x128xbf16>, vector<8x128xf32> -> vector<8x128xf32>
    %71 = vector.extract_strided_slice %0 {offsets = [0, 6], sizes = [8, 1], strides = [1, 1]} : vector<64x7xf32> to vector<8x1xf32>
    %72 = vector.broadcast %71 : vector<8x1xf32> to vector<8x128xf32>
    %73 = arith.addf %70, %72 : vector<8x128xf32>
    %c0_40 = arith.constant 0 : index
    %c0_41 = arith.constant 0 : index
    %74 = vector.load %arg13[%c0_40, %c0_41] : memref<8x128xf32, #tpu.memory_space<vmem>>, vector<8x128xf32>
    tpu.vector_store %arg13[%c0_40, %c0_41], %73 {strides = array<i32>} : memref<8x128xf32, #tpu.memory_space<vmem>>, vector<8x128xf32>,
    return
  }
  func.func @transform_0(%arg0: i32) -> (i32, i32) {
    %c0_i32 = arith.constant 0 : i32
    %c0_i32_0 = arith.constant 0 : i32
    return %c0_i32, %arg0 : i32, i32
  }
  func.func @transform_1(%arg0: i32) -> (i32, i32, i32) {
    %c0_i32 = arith.constant 0 : i32
    %c0_i32_0 = arith.constant 0 : i32
    %c0_i32_1 = arith.constant 0 : i32
    return %arg0, %c0_i32, %c0_i32_0 : i32, i32, i32
  }
  func.func @transform_2(%arg0: i32) -> (i32, i32) {
    %c0_i32 = arith.constant 0 : i32
    %c0_i32_0 = arith.constant 0 : i32
    %c0_i32_1 = arith.constant 0 : i32
    return %c0_i32, %c0_i32_0 : i32, i32
  }
  func.func @transform_3(%arg0: i32) -> (i32, i32) {
    %c0_i32 = arith.constant 0 : i32
    %c0_i32_0 = arith.constant 0 : i32
    %c0_i32_1 = arith.constant 0 : i32
    return %c0_i32, %c0_i32_0 : i32, i32
  }
  func.func @transform_4(%arg0: i32) -> (i32, i32) {
    %c0_i32 = arith.constant 0 : i32
    %c0_i32_0 = arith.constant 0 : i32
    %c0_i32_1 = arith.constant 0 : i32
    return %c0_i32, %c0_i32_0 : i32, i32
  }
  func.func @transform_5(%arg0: i32) -> (i32, i32) {
    %c0_i32 = arith.constant 0 : i32
    %c0_i32_0 = arith.constant 0 : i32
    %c0_i32_1 = arith.constant 0 : i32
    return %c0_i32, %c0_i32_0 : i32, i32
  }
  func.func @transform_6(%arg0: i32) -> (i32, i32) {
    %c0_i32 = arith.constant 0 : i32
    %c0_i32_0 = arith.constant 0 : i32
    %c0_i32_1 = arith.constant 0 : i32
    return %c0_i32, %c0_i32_0 : i32, i32
  }
  func.func @transform_7(%arg0: i32) -> (i32, i32) {
    %c0_i32 = arith.constant 0 : i32
    %c0_i32_0 = arith.constant 0 : i32
    %c0_i32_1 = arith.constant 0 : i32
    return %c0_i32, %c0_i32_0 : i32, i32
  }
  func.func @transform_8(%arg0: i32) -> (i32, i32) {
    %c0_i32 = arith.constant 0 : i32
    %c0_i32_0 = arith.constant 0 : i32
    %c0_i32_1 = arith.constant 0 : i32
    return %c0_i32, %c0_i32_0 : i32, i32
  }
  func.func @transform_9(%arg0: i32) -> (i32, i32) {
    %c0_i32 = arith.constant 0 : i32
    %c0_i32_0 = arith.constant 0 : i32
    %c0_i32_1 = arith.constant 0 : i32
    return %c0_i32, %c0_i32_0 : i32, i32
  }
  func.func @transform_10(%arg0: i32) -> (i32, i32) {
    %c0_i32 = arith.constant 0 : i32
    %c0_i32_0 = arith.constant 0 : i32
    %c0_i32_1 = arith.constant 0 : i32
    return %c0_i32, %c0_i32_0 : i32, i32
  }
  func.func @transform_11(%arg0: i32) -> (i32, i32) {
    %c0_i32 = arith.constant 0 : i32
    %c0_i32_0 = arith.constant 0 : i32
    %c0_i32_1 = arith.constant 0 : i32
    return %c0_i32, %c0_i32_0 : i32, i32
  }
  func.func @transform_12(%arg0: i32) -> (i32, i32) {
    %c0_i32 = arith.constant 0 : i32
    %c0_i32_0 = arith.constant 0 : i32
    return %c0_i32, %arg0 : i32, i32
  }
}

</mosaic_0001>

<llo_original>
// kernel: tpu_custom_call.1
$region0: #{tpu_custom_call.1}
  #allocation0 [shape = 'u32[]', space=smem, size = 0x4, offset = 0x4, fixed_abs, tag = 'smem constant byte address 0x4 - core index']
  #allocation1 [shape = 'u32[144,128]{1,0:T(1,128)}', space=vmem, size = 0x12000, scoped, tag = 'internal scratch']
  %s0 = inlined_call_operand.vmem [shape: bf16[16,256], index: 0, kind: input, shape index: {}]
  %s1 = inlined_call_operand.vmem [shape: f32[2,128,1], index: 1, kind: input, shape index: {}]
  %s2 = inlined_call_operand.vmem [shape: bf16[16,16], index: 2, kind: input, shape index: {}]
  %s3 = inlined_call_operand.vmem [shape: bf16[32,16], index: 3, kind: input, shape index: {}]
  %s4 = inlined_call_operand.vmem [shape: bf16[64,32], index: 4, kind: input, shape index: {}]
  %s5 = inlined_call_operand.vmem [shape: bf16[128,32], index: 5, kind: input, shape index: {}]
  %s6 = inlined_call_operand.vmem [shape: bf16[128,64], index: 6, kind: input, shape index: {}]
  %s7 = inlined_call_operand.vmem [shape: bf16[64,128], index: 7, kind: input, shape index: {}]
  %s8 = inlined_call_operand.vmem [shape: bf16[32,64], index: 8, kind: input, shape index: {}]
  %s9 = inlined_call_operand.vmem [shape: bf16[32,32], index: 9, kind: input, shape index: {}]
  %s10 = inlined_call_operand.vmem [shape: bf16[8,32], index: 10, kind: input, shape index: {}]
  %s11 = inlined_call_operand.vmem [shape: f32[64,7], index: 11, kind: input, shape index: {}]
  %s12 = inlined_call_operand.hbm [shape: f32[8,256], index: 12, kind: output, shape index: {}]
  %s13 = sld [smem:[#allocation0]]
  $region122: #{tpu_custom_call.1} parent=0
    _
  %s15 = ssub.s32 1, %s13
  %s16 = scalar_select 0, %s15, %s13
  $region1: #{tpu_custom_call.1} parent=0
    #allocation2 [shape = 'u8[8192]{0}', space=vmem, size = 0x2000, scoped, tag = 'input window, operand 0']
    #allocation3 [shape = 'u8[8192]{0}', space=vmem, size = 0x2000, scoped, tag = 'output window, operand 0']
    #allocation4 [shape = 's32[2]{0}', space=sflag, size = 0x8, scoped, tag = 'scoped memory for tpu_custom_call.1']
    %17 = vsyncpa [#allocation4], 0
    %s18 = scalar_lea.sflag [#allocation4], 1
    %19 = vsyncpa %s18, 0
    loop: start=0, step=1, limit=4
    $region2: #{tpu_custom_call.1} parent=1 // loop_pre_header
      _
    $region3: #{tpu_custom_call.1} parent=1 // loop_header
      %s21 = sphi 0, %s25
      %p22 = scmp.ge.s32.totalorder %s21, 4
      %s31 = sphi 0, %s33
      %s34 = sphi 0, %s31
      %s35 = sphi 0, %s34
      %s51 = sphi 0, %s35
      %s57 = sphi 0, %s59
      %s60 = sphi 0, %s57
      %s61 = sphi 0, %s60
      %s77 = sphi 0, %s61
      %s81 = sphi 0, %s81
      %s83 = sphi 0, %s81
      %s84 = sphi 0, %s83
      %s98 = sphi 0, %s84
      %s102 = sphi 0, %s102
      %s104 = sphi 0, %s102
      %s105 = sphi 0, %s104
      %s119 = sphi 0, %s105
      %s123 = sphi 0, %s123
      %s125 = sphi 0, %s123
      %s126 = sphi 0, %s125
      %s140 = sphi 0, %s126
      %s144 = sphi 0, %s144
      %s146 = sphi 0, %s144
      %s147 = sphi 0, %s146
      %s161 = sphi 0, %s147
      %s165 = sphi 0, %s165
      %s167 = sphi 0, %s165
      %s168 = sphi 0, %s167
      %s182 = sphi 0, %s168
      %s186 = sphi 0, %s186
      %s188 = sphi 0, %s186
      %s189 = sphi 0, %s188
      %s203 = sphi 0, %s189
      %s207 = sphi 0, %s207
      %s209 = sphi 0, %s207
      %s210 = sphi 0, %s209
      %s224 = sphi 0, %s210
      %s228 = sphi 0, %s228
      %s230 = sphi 0, %s228
      %s231 = sphi 0, %s230
      %s245 = sphi 0, %s231
      %s249 = sphi 0, %s249
      %s251 = sphi 0, %s249
      %s252 = sphi 0, %s251
      %s266 = sphi 0, %s252
      %s270 = sphi 0, %s270
      %s272 = sphi 0, %s270
      %s273 = sphi 0, %s272
      %s287 = sphi 0, %s273
      %s293 = sphi 0, %s295
      %s296 = sphi 0, %s293
      %s297 = sphi 0, %s296
      %s313 = sphi 0, %s297
    $region4: #{tpu_custom_call.1} parent=1 // loop_header_branch
      %24 = sbr.rel (%p22) target = $region8
    $region5: #{tpu_custom_call.1} parent=1 // loop_body
      %s26 = ssub.s32 %s21, 1
      %s27 = ssub.s32 %s21, 2
      %s28 = sadd.s32 %s21, 1
      %s29 = ssub.s32 %s21, %s28
      %p30 = scmp.eq.s32.totalorder %s29, 0
      %s32 = sadd.s32 %s31, 1
      %s33 = scalar_select %p30, %s31, %s32
      %p36 = pneg %p30
      %p37 = scmp.eq.s32.totalorder %s21, 1
      %p38 = por %p36, %p37
      %p39 = scmp.ne.s32.totalorder %s31, %s34
      %p40 = scmp.eq.s32.totalorder %s21, 0
      %p41 = por %p39, %p40
      %p42 = scmp.ne.s32.totalorder %s31, %s34
      %p43 = scmp.eq.s32.totalorder %s26, 1
      %p44 = por %p42, %p43
      %p45 = scmp.ne.s32.totalorder %s34, %s35
      %p46 = scmp.eq.s32.totalorder %s26, 0
      %p47 = por %p45, %p46
      %p48 = scmp.ne.s32.totalorder %s34, %s35
      %p49 = scmp.eq.s32.totalorder %s27, 1
      %p50 = por %p48, %p49
      %p52 = scmp.ne.s32.totalorder %s35, %s51
      %p53 = scmp.eq.s32.totalorder %s27, 0
      %p54 = por %p52, %p53
      %s55 = ssub.s32 %s21, %s28
      %p56 = scmp.eq.s32.totalorder %s55, 0
      %s58 = sadd.s32 %s57, 1
      %s59 = scalar_select %p56, %s57, %s58
      %p62 = pneg %p56
      %p63 = scmp.eq.s32.totalorder %s21, 1
      %p64 = por %p62, %p63
      %p65 = scmp.ne.s32.totalorder %s57, %s60
      %p66 = scmp.eq.s32.totalorder %s21, 0
      %p67 = por %p65, %p66
      %p68 = scmp.ne.s32.totalorder %s57, %s60
      %p69 = scmp.eq.s32.totalorder %s26, 1
      %p70 = por %p68, %p69
      %p71 = scmp.ne.s32.totalorder %s60, %s61
      %p72 = scmp.eq.s32.totalorder %s26, 0
      %p73 = por %p71, %p72
      %p74 = scmp.ne.s32.totalorder %s60, %s61
      %p75 = scmp.eq.s32.totalorder %s27, 1
      %p76 = por %p74, %p75
      %p78 = scmp.ne.s32.totalorder %s61, %s77
      %p79 = scmp.eq.s32.totalorder %s27, 0
      %p80 = por %p78, %p79
      %s82 = sadd.s32 %s81, 1
      %p85 = scmp.eq.s32.totalorder %s21, 1
      %p86 = scmp.ne.s32.totalorder %s81, %s83
      %p87 = scmp.eq.s32.totalorder %s21, 0
      %p88 = por %p86, %p87
      %p89 = scmp.ne.s32.totalorder %s81, %s83
      %p90 = scmp.eq.s32.totalorder %s26, 1
      %p91 = por %p89, %p90
      %p92 = scmp.ne.s32.totalorder %s83, %s84
      %p93 = scmp.eq.s32.totalorder %s26, 0
      %p94 = por %p92, %p93
      %p95 = scmp.ne.s32.totalorder %s83, %s84
      %p96 = scmp.eq.s32.totalorder %s27, 1
      %p97 = por %p95, %p96
      %p99 = scmp.ne.s32.totalorder %s84, %s98
      %p100 = scmp.eq.s32.totalorder %s27, 0
      %p101 = por %p99, %p100
      %s103 = sadd.s32 %s102, 1
      %p106 = scmp.eq.s32.totalorder %s21, 1
      %p107 = scmp.ne.s32.totalorder %s102, %s104
      %p108 = scmp.eq.s32.totalorder %s21, 0
      %p109 = por %p107, %p108
      %p110 = scmp.ne.s32.totalorder %s102, %s104
      %p111 = scmp.eq.s32.totalorder %s26, 1
      %p112 = por %p110, %p111
      %p113 = scmp.ne.s32.totalorder %s104, %s105
      %p114 = scmp.eq.s32.totalorder %s26, 0
      %p115 = por %p113, %p114
      %p116 = scmp.ne.s32.totalorder %s104, %s105
      %p117 = scmp.eq.s32.totalorder %s27, 1
      %p118 = por %p116, %p117
      %p120 = scmp.ne.s32.totalorder %s105, %s119
      %p121 = scmp.eq.s32.totalorder %s27, 0
      %p122 = por %p120, %p121
      %s124 = sadd.s32 %s123, 1
      %p127 = scmp.eq.s32.totalorder %s21, 1
      %p128 = scmp.ne.s32.totalorder %s123, %s125
      %p129 = scmp.eq.s32.totalorder %s21, 0
      %p130 = por %p128, %p129
      %p131 = scmp.ne.s32.totalorder %s123, %s125
      %p132 = scmp.eq.s32.totalorder %s26, 1
      %p133 = por %p131, %p132
      %p134 = scmp.ne.s32.totalorder %s125, %s126
      %p135 = scmp.eq.s32.totalorder %s26, 0
      %p136 = por %p134, %p135
      %p137 = scmp.ne.s32.totalorder %s125, %s126
      %p138 = scmp.eq.s32.totalorder %s27, 1
      %p139 = por %p137, %p138
      %p141 = scmp.ne.s32.totalorder %s126, %s140
      %p142 = scmp.eq.s32.totalorder %s27, 0
      %p143 = por %p141, %p142
      %s145 = sadd.s32 %s144, 1
      %p148 = scmp.eq.s32.totalorder %s21, 1
      %p149 = scmp.ne.s32.totalorder %s144, %s146
      %p150 = scmp.eq.s32.totalorder %s21, 0
      %p151 = por %p149, %p150
      %p152 = scmp.ne.s32.totalorder %s144, %s146
      %p153 = scmp.eq.s32.totalorder %s26, 1
      %p154 = por %p152, %p153
      %p155 = scmp.ne.s32.totalorder %s146, %s147
      %p156 = scmp.eq.s32.totalorder %s26, 0
      %p157 = por %p155, %p156
      %p158 = scmp.ne.s32.totalorder %s146, %s147
      %p159 = scmp.eq.s32.totalorder %s27, 1
      %p160 = por %p158, %p159
      %p162 = scmp.ne.s32.totalorder %s147, %s161
      %p163 = scmp.eq.s32.totalorder %s27, 0
      %p164 = por %p162, %p163
      %s166 = sadd.s32 %s165, 1
      %p169 = scmp.eq.s32.totalorder %s21, 1
      %p170 = scmp.ne.s32.totalorder %s165, %s167
      %p171 = scmp.eq.s32.totalorder %s21, 0
      %p172 = por %p170, %p171
      %p173 = scmp.ne.s32.totalorder %s165, %s167
      %p174 = scmp.eq.s32.totalorder %s26, 1
      %p175 = por %p173, %p174
      %p176 = scmp.ne.s32.totalorder %s167, %s168
      %p177 = scmp.eq.s32.totalorder %s26, 0
      %p178 = por %p176, %p177
      %p179 = scmp.ne.s32.totalorder %s167, %s168
      %p180 = scmp.eq.s32.totalorder %s27, 1
      %p181 = por %p179, %p180
      %p183 = scmp.ne.s32.totalorder %s168, %s182
      %p184 = scmp.eq.s32.totalorder %s27, 0
      %p185 = por %p183, %p184
      %s187 = sadd.s32 %s186, 1
      %p190 = scmp.eq.s32.totalorder %s21, 1
      %p191 = scmp.ne.s32.totalorder %s186, %s188
      %p192 = scmp.eq.s32.totalorder %s21, 0
      %p193 = por %p191, %p192
      %p194 = scmp.ne.s32.totalorder %s186, %s188
      %p195 = scmp.eq.s32.totalorder %s26, 1
      %p196 = por %p194, %p195
      %p197 = scmp.ne.s32.totalorder %s188, %s189
      %p198 = scmp.eq.s32.totalorder %s26, 0
      %p199 = por %p197, %p198
      %p200 = scmp.ne.s32.totalorder %s188, %s189
      %p201 = scmp.eq.s32.totalorder %s27, 1
      %p202 = por %p200, %p201
      %p204 = scmp.ne.s32.totalorder %s189, %s203
      %p205 = scmp.eq.s32.totalorder %s27, 0
      %p206 = por %p204, %p205
      %s208 = sadd.s32 %s207, 1
      %p211 = scmp.eq.s32.totalorder %s21, 1
      %p212 = scmp.ne.s32.totalorder %s207, %s209
      %p213 = scmp.eq.s32.totalorder %s21, 0
      %p214 = por %p212, %p213
      %p215 = scmp.ne.s32.totalorder %s207, %s209
      %p216 = scmp.eq.s32.totalorder %s26, 1
      %p217 = por %p215, %p216
      %p218 = scmp.ne.s32.totalorder %s209, %s210
      %p219 = scmp.eq.s32.totalorder %s26, 0
      %p220 = por %p218, %p219
      %p221 = scmp.ne.s32.totalorder %s209, %s210
      %p222 = scmp.eq.s32.totalorder %s27, 1
      %p223 = por %p221, %p222
      %p225 = scmp.ne.s32.totalorder %s210, %s224
      %p226 = scmp.eq.s32.totalorder %s27, 0
      %p227 = por %p225, %p226
      %s229 = sadd.s32 %s228, 1
      %p232 = scmp.eq.s32.totalorder %s21, 1
      %p233 = scmp.ne.s32.totalorder %s228, %s230
      %p234 = scmp.eq.s32.totalorder %s21, 0
      %p235 = por %p233, %p234
      %p236 = scmp.ne.s32.totalorder %s228, %s230
      %p237 = scmp.eq.s32.totalorder %s26, 1
      %p238 = por %p236, %p237
      %p239 = scmp.ne.s32.totalorder %s230, %s231
      %p240 = scmp.eq.s32.totalorder %s26, 0
      %p241 = por %p239, %p240
      %p242 = scmp.ne.s32.totalorder %s230, %s231
      %p243 = scmp.eq.s32.totalorder %s27, 1
      %p244 = por %p242, %p243
      %p246 = scmp.ne.s32.totalorder %s231, %s245
      %p247 = scmp.eq.s32.totalorder %s27, 0
      %p248 = por %p246, %p247
      %s250 = sadd.s32 %s249, 1
      %p253 = scmp.eq.s32.totalorder %s21, 1
      %p254 = scmp.ne.s32.totalorder %s249, %s251
      %p255 = scmp.eq.s32.totalorder %s21, 0
      %p256 = por %p254, %p255
      %p257 = scmp.ne.s32.totalorder %s249, %s251
      %p258 = scmp.eq.s32.totalorder %s26, 1
      %p259 = por %p257, %p258
      %p260 = scmp.ne.s32.totalorder %s251, %s252
      %p261 = scmp.eq.s32.totalorder %s26, 0
      %p262 = por %p260, %p261
      %p263 = scmp.ne.s32.totalorder %s251, %s252
      %p264 = scmp.eq.s32.totalorder %s27, 1
      %p265 = por %p263, %p264
      %p267 = scmp.ne.s32.totalorder %s252, %s266
      %p268 = scmp.eq.s32.totalorder %s27, 0
      %p269 = por %p267, %p268
      %s271 = sadd.s32 %s270, 1
      %p274 = scmp.eq.s32.totalorder %s21, 1
      %p275 = scmp.ne.s32.totalorder %s270, %s272
      %p276 = scmp.eq.s32.totalorder %s21, 0
      %p277 = por %p275, %p276
      %p278 = scmp.ne.s32.totalorder %s270, %s272
      %p279 = scmp.eq.s32.totalorder %s26, 1
      %p280 = por %p278, %p279
      %p281 = scmp.ne.s32.totalorder %s272, %s273
      %p282 = scmp.eq.s32.totalorder %s26, 0
      %p283 = por %p281, %p282
      %p284 = scmp.ne.s32.totalorder %s272, %s273
      %p285 = scmp.eq.s32.totalorder %s27, 1
      %p286 = por %p284, %p285
      %p288 = scmp.ne.s32.totalorder %s273, %s287
      %p289 = scmp.eq.s32.totalorder %s27, 0
      %p290 = por %p288, %p289
      %s291 = ssub.s32 %s21, %s28
      %p292 = scmp.eq.s32.totalorder %s291, 0
      %s294 = sadd.s32 %s293, 1
      %s295 = scalar_select %p292, %s293, %s294
      %p298 = pneg %p292
      %p299 = scmp.eq.s32.totalorder %s21, 1
      %p300 = por %p298, %p299
      %p301 = scmp.ne.s32.totalorder %s293, %s296
      %p302 = scmp.eq.s32.totalorder %s21, 0
      %p303 = por %p301, %p302
      %p304 = scmp.ne.s32.totalorder %s293, %s296
      %p305 = scmp.eq.s32.totalorder %s26, 1
      %p306 = por %p304, %p305
      %p307 = scmp.ne.s32.totalorder %s296, %s297
      %p308 = scmp.eq.s32.totalorder %s26, 0
      %p309 = por %p307, %p308
      %p310 = scmp.ne.s32.totalorder %s296, %s297
      %p311 = scmp.eq.s32.totalorder %s27, 1
      %p312 = por %p310, %p311
      %p314 = scmp.ne.s32.totalorder %s297, %s313
      %p315 = scmp.eq.s32.totalorder %s27, 0
      %p316 = por %p314, %p315
      %p317 = scmp.le.s32.totalorder 1, %s21
      %p318 = scmp.lt.s32.totalorder %s21, 3
      %p319 = pnand %p317, %p318
      %p320 = pneg %p319
      // Predicated region
      $region9: #{tpu_custom_call.1} parent=5 // pred_check
        _
      $region10: #{tpu_custom_call.1} parent=5 // pred_check_branch
        %322 = sbr.rel (%p319) target = $region12
      $region11: #{tpu_custom_call.1} parent=5 // pred_region
        %s323 = ssub.s32 %s21, 1
        // Predicated region
        $region13: #{tpu_custom_call.1} parent=11 // pred_check
          %p324 = pneg %p94
        $region14: #{tpu_custom_call.1} parent=11 // pred_check_branch
          %326 = sbr.rel (%p324) target = $region16
        $region15: #{tpu_custom_call.1} parent=11 // pred_region
          _
        $region16: #{tpu_custom_call.1} parent=11 // pred_fallthru
          _
        // Predicated region
        $region17: #{tpu_custom_call.1} parent=11 // pred_check
          %p327 = pneg %p115
        $region18: #{tpu_custom_call.1} parent=11 // pred_check_branch
          %329 = sbr.rel (%p327) target = $region20
        $region19: #{tpu_custom_call.1} parent=11 // pred_region
          _
        $region20: #{tpu_custom_call.1} parent=11 // pred_fallthru
          _
        // Predicated region
        $region21: #{tpu_custom_call.1} parent=11 // pred_check
          %p330 = pneg %p136
        $region22: #{tpu_custom_call.1} parent=11 // pred_check_branch
          %332 = sbr.rel (%p330) target = $region24
        $region23: #{tpu_custom_call.1} parent=11 // pred_region
          _
        $region24: #{tpu_custom_call.1} parent=11 // pred_fallthru
          _
        // Predicated region
        $region25: #{tpu_custom_call.1} parent=11 // pred_check
          %p333 = pneg %p157
        $region26: #{tpu_custom_call.1} parent=11 // pred_check_branch
          %335 = sbr.rel (%p333) target = $region28
        $region27: #{tpu_custom_call.1} parent=11 // pred_region
          _
        $region28: #{tpu_custom_call.1} parent=11 // pred_fallthru
          _
        // Predicated region
        $region29: #{tpu_custom_call.1} parent=11 // pred_check
          %p336 = pneg %p178
        $region30: #{tpu_custom_call.1} parent=11 // pred_check_branch
          %338 = sbr.rel (%p336) target = $region32
        $region31: #{tpu_custom_call.1} parent=11 // pred_region
          _
        $region32: #{tpu_custom_call.1} parent=11 // pred_fallthru
          _
        // Predicated region
        $region33: #{tpu_custom_call.1} parent=11 // pred_check
          %p339 = pneg %p199
        $region34: #{tpu_custom_call.1} parent=11 // pred_check_branch
          %341 = sbr.rel (%p339) target = $region36
        $region35: #{tpu_custom_call.1} parent=11 // pred_region
          _
        $region36: #{tpu_custom_call.1} parent=11 // pred_fallthru
          _
        // Predicated region
        $region37: #{tpu_custom_call.1} parent=11 // pred_check
          %p342 = pneg %p220
        $region38: #{tpu_custom_call.1} parent=11 // pred_check_branch
          %344 = sbr.rel (%p342) target = $region40
        $region39: #{tpu_custom_call.1} parent=11 // pred_region
          _
        $region40: #{tpu_custom_call.1} parent=11 // pred_fallthru
          _
        // Predicated region
        $region41: #{tpu_custom_call.1} parent=11 // pred_check
          %p345 = pneg %p241
        $region42: #{tpu_custom_call.1} parent=11 // pred_check_branch
          %347 = sbr.rel (%p345) target = $region44
        $region43: #{tpu_custom_call.1} parent=11 // pred_region
          _
        $region44: #{tpu_custom_call.1} parent=11 // pred_fallthru
          _
        // Predicated region
        $region45: #{tpu_custom_call.1} parent=11 // pred_check
          %p348 = pneg %p262
        $region46: #{tpu_custom_call.1} parent=11 // pred_check_branch
          %350 = sbr.rel (%p348) target = $region48
        $region47: #{tpu_custom_call.1} parent=11 // pred_region
          _
        $region48: #{tpu_custom_call.1} parent=11 // pred_fallthru
          _
        // Predicated region
        $region49: #{tpu_custom_call.1} parent=11 // pred_check
          %p351 = pneg %p283
        $region50: #{tpu_custom_call.1} parent=11 // pred_check_branch
          %353 = sbr.rel (%p351) target = $region52
        $region51: #{tpu_custom_call.1} parent=11 // pred_region
          _
        $region52: #{tpu_custom_call.1} parent=11 // pred_fallthru
          _
      $region12: #{tpu_custom_call.1} parent=5 // pred_fallthru
        _
      %p354 = scmp.lt.s32.totalorder %s21, 2
      // Predicated region
      $region53: #{tpu_custom_call.1} parent=5 // pred_check
        %p355 = pneg %p354
      $region54: #{tpu_custom_call.1} parent=5 // pred_check_branch
        %357 = sbr.rel (%p355) target = $region56
      $region55: #{tpu_custom_call.1} parent=5 // pred_region
        // Predicated region
        $region57: #{tpu_custom_call.1} parent=55 // pred_check
          %p358 = pneg %p41
        $region58: #{tpu_custom_call.1} parent=55 // pred_check_branch
          %360 = sbr.rel (%p358) target = $region60
        $region59: #{tpu_custom_call.1} parent=55 // pred_region
          %s361 = sand.u32 %s31, 1
          %s362 = sand.u32 %s31, 1
          %s363 = smul.addr %s362, 8
          %s364 = scalar_lea.vmem [#allocation2], %s363
          %s365 = smul.addr %s21, 4
          %s366 = scalar_lea.vmem %s0, %s365
          // Predicated region
          $region61: #{tpu_custom_call.1} parent=59 // pred_check
            _
          $region62: #{tpu_custom_call.1} parent=59 // pred_check_branch
            %368 = sbr.rel (0) target = $region64
          $region63: #{tpu_custom_call.1} parent=59 // pred_region
            // Predicated region
            $region65: #{tpu_custom_call.1} parent=63 // pred_check
              _
            $region66: #{tpu_custom_call.1} parent=63 // pred_check_branch
              %370 = sbr.rel target = $region68
            $region67: #{tpu_custom_call.1} parent=63 // pred_region
              // Predicated region
              $region80: #{tpu_custom_call.1} parent=67 // pred_check
                _
              $region81: #{tpu_custom_call.1} parent=67 // pred_check_branch
                %388 = sbr.rel (0) target = $region83
              $region82: #{tpu_custom_call.1} parent=67 // pred_region
                loop: start=0, step=1, limit=1
                $region84: #{tpu_custom_call.1} parent=82 // loop_pre_header
                  _
                $region85: #{tpu_custom_call.1} parent=82 // loop_header
                  %s390 = sphi 0, %s394
                  %p391 = scmp.ge.s32.totalorder %s390, 1
                  %s395 = sphi %s366, %s366
                  %s396 = sphi %s364, %s364
                $region86: #{tpu_custom_call.1} parent=82 // loop_header_branch
                  %393 = sbr.rel (%p391) target = $region90
                $region87: #{tpu_custom_call.1} parent=82 // loop_body
                  _
                $region88: #{tpu_custom_call.1} parent=82 // loop_footer
                  %s394 = sadd.s32 1, %s390
                $region89: #{tpu_custom_call.1} parent=82 // loop_footer_branch
                  %389 = sbr.rel target = $region85
                $region90: #{tpu_custom_call.1} parent=82 // loop_exit
                  _
                %s398 = ssub.s32 16, 1
                loop: start=0, step=1, limit=1
                $region91: #{tpu_custom_call.1} parent=82 // loop_pre_header
                  _
                $region92: #{tpu_custom_call.1} parent=82 // loop_header
                  %s400 = sphi 0, %s404
                  %p401 = scmp.ge.s32.totalorder %s400, 1
                  %s405 = sphi %s366, %s366
                  %s406 = sphi %s364, %s364
                $region93: #{tpu_custom_call.1} parent=82 // loop_header_branch
                  %403 = sbr.rel (%p401) target = $region97
                $region94: #{tpu_custom_call.1} parent=82 // loop_body
                  %v407 = vld [vmem:[%s405] sm:%s398]
                  %408 = vst [vmem:[%s406] sm:%s398] %v407
                  %v409 = vld [vmem:[%s405 + $0x8] sm:%s398]
                  %410 = vst [vmem:[%s406 + $0x4] sm:%s398] %v409
                $region95: #{tpu_custom_call.1} parent=82 // loop_footer
                  %s404 = sadd.s32 1, %s400
                $region96: #{tpu_custom_call.1} parent=82 // loop_footer_branch
                  %399 = sbr.rel target = $region92
                $region97: #{tpu_custom_call.1} parent=82 // loop_exit
                  _
              $region83: #{tpu_custom_call.1} parent=67 // pred_fallthru
                _
            $region68: #{tpu_custom_call.1} parent=63 // pred_fallthru
              _
            // Predicated region
            $region69: #{tpu_custom_call.1} parent=63 // pred_check
              _
            $region70: #{tpu_custom_call.1} parent=63 // pred_check_branch
              %372 = sbr.rel (0) target = $region72
            $region71: #{tpu_custom_call.1} parent=63 // pred_region
              %s374 = ssub.s32 16, 1
              loop: start=0, step=1, limit=1
              $region73: #{tpu_custom_call.1} parent=71 // loop_pre_header
                _
              $region74: #{tpu_custom_call.1} parent=71 // loop_header
                %s376 = sphi 0, %s380
                %p377 = scmp.ge.s32.totalorder %s376, 1
                %s381 = sphi %s366, %s366
                %s382 = sphi %s364, %s364
              $region75: #{tpu_custom_call.1} parent=71 // loop_header_branch
                %379 = sbr.rel (%p377) target = $region79
              $region76: #{tpu_custom_call.1} parent=71 // loop_body
                %v383 = vld [vmem:[%s381] sm:%s374]
                %384 = vst [vmem:[%s382] sm:%s374] %v383
                %v385 = vld [vmem:[%s381 + $0x8] sm:%s374]
                %386 = vst [vmem:[%s382 + $0x4] sm:%s374] %v385
              $region77: #{tpu_custom_call.1} parent=71 // loop_footer
                %s380 = sadd.s32 1, %s376
              $region78: #{tpu_custom_call.1} parent=71 // loop_footer_branch
                %375 = sbr.rel target = $region74
              $region79: #{tpu_custom_call.1} parent=71 // loop_exit
                _
            $region72: #{tpu_custom_call.1} parent=63 // pred_fallthru
              _
          $region64: #{tpu_custom_call.1} parent=59 // pred_fallthru
            _
          %411 = vnop
        $region60: #{tpu_custom_call.1} parent=55 // pred_fallthru
          _
        // Predicated region
        $region98: #{tpu_custom_call.1} parent=55 // pred_check
          %p412 = pneg %p67
        $region99: #{tpu_custom_call.1} parent=55 // pred_check_branch
          %414 = sbr.rel (%p412) target = $region101
        $region100: #{tpu_custom_call.1} parent=55 // pred_region
          %p415 = scmp.lt.s32.totalorder %s21, 1
          %s416 = scalar_select %p415, %s21, 1
          %s417 = smul.addr %s416, 16
          %s418 = smul.addr %s417, 8
          %s419 = scalar_lea.vmem %s1, %s418
        $region101: #{tpu_custom_call.1} parent=55 // pred_fallthru
          _
      $region56: #{tpu_custom_call.1} parent=5 // pred_fallthru
        _
      %p420 = scmp.le.s32.totalorder 1, %s21
      %p421 = scmp.lt.s32.totalorder %s21, 3
      %p422 = pnand %p420, %p421
      %p423 = pneg %p422
      // Predicated region
      $region102: #{tpu_custom_call.1} parent=5 // pred_check
        _
      $region103: #{tpu_custom_call.1} parent=5 // pred_check_branch
        %425 = sbr.rel (%p422) target = $region105
      $region104: #{tpu_custom_call.1} parent=5 // pred_region
        %s426 = ssub.s32 %s21, 1
        %s427 = sand.u32 %s34, 1
        %s428 = sand.u32 %s34, 1
        %s429 = smul.addr %s428, 8
        %s430 = scalar_lea.vmem [#allocation2], %s429
        // Predicated region
        $region106: #{tpu_custom_call.1} parent=104 // pred_check
          %p431 = pneg %p47
        $region107: #{tpu_custom_call.1} parent=104 // pred_check_branch
          %433 = sbr.rel (%p431) target = $region109
        $region108: #{tpu_custom_call.1} parent=104 // pred_region
          _
        $region109: #{tpu_custom_call.1} parent=104 // pred_fallthru
          _
        %s434 = sand.u32 %s34, 1
        %s435 = sand.u32 %s34, 1
        %s436 = smul.addr %s435, 8
        %s437 = scalar_lea.vmem [#allocation2], %s436
        %p438 = pneg %p47
        %p439 = pneg %p44
        %p440 = scmp.lt.s32.totalorder %s26, 1
        %s441 = scalar_select %p440, %s26, 1
        %s442 = smul.addr %s441, 16
        %s443 = smul.addr %s442, 8
        %s444 = scalar_lea.vmem %s1, %s443
        %p445 = pneg %p73
        %p446 = pneg %p70
        %p447 = pneg %p94
        %p448 = pneg %p91
        %p449 = pneg %p115
        %p450 = pneg %p112
        %p451 = pneg %p136
        %p452 = pneg %p133
        %p453 = pneg %p157
        %p454 = pneg %p154
        %p455 = pneg %p178
        %p456 = pneg %p175
        %p457 = pneg %p199
        %p458 = pneg %p196
        %p459 = pneg %p220
        %p460 = pneg %p217
        %p461 = pneg %p241
        %p462 = pneg %p238
        %p463 = pneg %p262
        %p464 = pneg %p259
        %p465 = pneg %p283
        %p466 = pneg %p280
        %p467 = pneg %p309
        %p468 = pneg %p306
        %s469 = sand.u32 %s296, 1
        %s470 = scalar_lea.sflag [#allocation4], %s469
        %s471 = sand.u32 %s296, 1
        %s472 = smul.addr %s471, 8
        %s473 = scalar_lea.vmem [#allocation3], %s472
        %p474 = scmp.lt.s32.totalorder %s26, 1
        %s475 = scalar_select %p474, %s26, 1
        %s476 = smul.addr %s475, 16
        %s477 = smul.addr %s476, 8
        %s478 = scalar_lea.vmem %s1, %s477
        %v480 = vld [vmem:[%s11] sm:$0xff]
        %v481 = vld [vmem:[%s11 + $0x8] sm:$0xff]
        %v482 = vld [vmem:[%s11 + $0x10] sm:$0xff]
        %v483 = vld [vmem:[%s11 + $0x18] sm:$0xff]
        %v484 = vld [vmem:[%s11 + $0x20] sm:$0xff]
        %v485 = vld [vmem:[%s11 + $0x28] sm:$0xff]
        %v486 = vld [vmem:[%s11 + $0x30] sm:$0xff]
        %v487 = vld [vmem:[%s11 + $0x38] sm:$0xff]
        %v488 = vld [vmem:[%s430] sm:$0xf]
        %v489 = vld [vmem:[%s430 + $0x4] sm:$0xf]
        %v490 = vld [vmem:[%s2] sm:$0xf]
        %v491 = vld [vmem:[%s2 + $0x4] sm:$0xf]
        %v494 = vunpack.c.l.b16 %v490
        %v495 = vunpack.c.l.b16 %v491
        %v496 = vpack.c.b16 %v495, %v494
        %v499 = vunpack.c.l.b16 %v488
        %v500 = vunpack.c.l.b16 %v489
        %v501 = vpack.c.b16 %v500, %v499
        %vm503 = vcmask 130048
        %v505 = vsel %vm503, %v496, 0
        %507 = vmatprep.subr.bf16.mxu0 0
        %508 = vmatpush1.bf16.msra.mxu0 0
        %509 = vmatprep.subr.bf16.mxu0 0
        %510 = vmatpush1.bf16.msra.mxu0 0
        %511 = vmatprep.subr.bf16.mxu0 0
        %512 = vmatpush1.bf16.msra.mxu0 0
        %513 = vmatprep.subr.bf16.mxu0 0
        %514 = vmatpush1.bf16.msra.mxu0 0
        %515 = vmatprep.subr.bf16.mxu0 0
        %516 = vmatpush1.bf16.msra.mxu0 0
        %517 = vmatprep.subr.bf16.mxu0 0
        %518 = vmatpush1.bf16.msra.mxu0 0
        %519 = vmatprep.subr.bf16.mxu0 0
        %520 = vmatpush1.bf16.msra.mxu0 0
        %521 = vmatprep.subr.bf16.mxu0 0
        %522 = vmatpush1.bf16.msra.mxu0 %v501
        %523 = vmatprep.subr.bf16.mxu0 0
        %524 = vmatpush2.bf16.msra.mxu0 0
        %525 = vmatprep.subr.bf16.mxu0 0
        %526 = vmatpush2.bf16.msra.mxu0 0
        %527 = vmatprep.subr.bf16.mxu0 0
        %528 = vmatpush2.bf16.msra.mxu0 0
        %529 = vmatprep.subr.bf16.mxu0 0
        %530 = vmatpush2.bf16.msra.mxu0 0
        %531 = vmatprep.subr.bf16.mxu0 0
        %532 = vmatpush2.bf16.msra.mxu0 0
        %533 = vmatprep.subr.bf16.mxu0 0
        %534 = vmatpush2.bf16.msra.mxu0 0
        %535 = vmatprep.subr.bf16.mxu0 0
        %536 = vmatpush2.bf16.msra.mxu0 0
        %537 = vmatprep.subr.bf16.mxu0 0
        %538 = vmatpush2.bf16.msra.mxu0 0
        %539 = vmatprep.mubr.bf16.mxu0 0
        %540 = vmatmul.mubr.bf16.gmra.mxu0 %v505
        %v541 = vpop.f32.mrf.mxu0
        %v542 = vadd.f32 0.0, %v541
        %v543 = vpop.f32.mrf.mxu0
        %v544 = vpop.f32.mrf.mxu0
        %v545 = vadd.f32 0.0, %v544
        %v546 = vpop.f32.mrf.mxu0
        %547 = vdwg.mxu0
        %v548 = vpack.c.bf16 %v545, %v542
        %v549 = vpack.c.bf16 %v481, %v480
        %551 = vset.pattern.permute.xlu0 0
        %552 = vperm.xlu0 %551, %v549
        %v553 = vpop.permute.xlu0 %552
        %v555 = vadd.bf16 %v548, %v553
        %v556 = vmax.bf16 %v555, 0
        %v557 = vld [vmem:[%s3] sm:$0xf]
        %v558 = vld [vmem:[%s3 + $0x4] sm:$0xf]
        %v559 = vld [vmem:[%s3 + $0x8] sm:$0xf]
        %v560 = vld [vmem:[%s3 + $0xc] sm:$0xf]
        %v565 = vunpack.c.l.b16 %v557
        %v566 = vunpack.c.l.b16 %v558
        %v567 = vunpack.c.l.b16 %v559
        %v568 = vunpack.c.l.b16 %v560
        %v569 = vpack.c.b16 %v566, %v565
        %v570 = vpack.c.b16 %v568, %v567
        %v572 = vsel %vm503, %v569, 0
        %v575 = vsel %vm503, %v570, 0
        %577 = vmatprep.subr.bf16.mxu0 0
        %578 = vmatpush1.bf16.msra.mxu0 0
        %579 = vmatprep.subr.bf16.mxu0 0
        %580 = vmatpush1.bf16.msra.mxu0 0
        %581 = vmatprep.subr.bf16.mxu0 0
        %582 = vmatpush1.bf16.msra.mxu0 0
        %583 = vmatprep.subr.bf16.mxu0 0
        %584 = vmatpush1.bf16.msra.mxu0 0
        %585 = vmatprep.subr.bf16.mxu0 0
        %586 = vmatpush1.bf16.msra.mxu0 0
        %587 = vmatprep.subr.bf16.mxu0 0
        %588 = vmatpush1.bf16.msra.mxu0 0
        %589 = vmatprep.subr.bf16.mxu0 0
        %590 = vmatpush1.bf16.msra.mxu0 0
        %591 = vmatprep.subr.bf16.mxu0 0
        %592 = vmatpush1.bf16.msra.mxu0 %v556
        %593 = vmatprep.subr.bf16.mxu0 0
        %594 = vmatpush2.bf16.msra.mxu0 0
        %595 = vmatprep.subr.bf16.mxu0 0
        %596 = vmatpush2.bf16.msra.mxu0 0
        %597 = vmatprep.subr.bf16.mxu0 0
        %598 = vmatpush2.bf16.msra.mxu0 0
        %599 = vmatprep.subr.bf16.mxu0 0
        %600 = vmatpush2.bf16.msra.mxu0 0
        %601 = vmatprep.subr.bf16.mxu0 0
        %602 = vmatpush2.bf16.msra.mxu0 0
        %603 = vmatprep.subr.bf16.mxu0 0
        %604 = vmatpush2.bf16.msra.mxu0 0
        %605 = vmatprep.subr.bf16.mxu0 0
        %606 = vmatpush2.bf16.msra.mxu0 0
        %607 = vmatprep.subr.bf16.mxu0 0
        %608 = vmatpush2.bf16.msra.mxu0 0
        %609 = vmatprep.mubr.bf16.mxu0 0
        %610 = vmatmul.mubr.bf16.gmra.mxu0 %v572
        %v611 = vpop.f32.mrf.mxu0
        %v612 = vadd.f32 0.0, %v611
        %v613 = vpop.f32.mrf.mxu0
        %v614 = vpop.f32.mrf.mxu0
        %v615 = vadd.f32 0.0, %v614
        %v616 = vpop.f32.mrf.mxu0
        %617 = vmatprep.mubr.bf16.mxu0 0
        %618 = vmatmul.mubr.bf16.gmra.mxu0 %v575
        %v619 = vpop.f32.mrf.mxu0
        %v620 = vadd.f32 0.0, %v619
        %v621 = vpop.f32.mrf.mxu0
        %v622 = vpop.f32.mrf.mxu0
        %v623 = vadd.f32 0.0, %v622
        %v624 = vpop.f32.mrf.mxu0
        %625 = vdwg.mxu0
        %v626 = vpack.c.bf16 %v615, %v612
        %v627 = vpack.c.bf16 %v623, %v620
        %v628 = vpack.c.bf16 %v483, %v482
        %629 = vset.pattern.permute.xlu0 1
        %630 = vperm.xlu0 %629, %v549
        %v631 = vpop.permute.xlu0 %630
        %634 = vset.pattern.permute.xlu0 1
        %635 = vperm.xlu0 %634, %v628
        %v636 = vpop.permute.xlu0 %635
        %v638 = vadd.bf16 %v626, %v631
        %v639 = vadd.bf16 %v627, %v636
        %v640 = vmax.bf16 %v638, 0
        %v641 = vmax.bf16 %v639, 0
        %v642 = vld [vmem:[%s4] sm:$0xf]
        %v643 = vld [vmem:[%s4 + $0x4] sm:$0xf]
        %v644 = vld [vmem:[%s4 + $0x8] sm:$0xf]
        %v645 = vld [vmem:[%s4 + $0xc] sm:$0xf]
        %v646 = vld [vmem:[%s4 + $0x10] sm:$0xf]
        %v647 = vld [vmem:[%s4 + $0x14] sm:$0xf]
        %v648 = vld [vmem:[%s4 + $0x18] sm:$0xf]
        %v649 = vld [vmem:[%s4 + $0x1c] sm:$0xf]
        %651 = vset.pattern.permute.xlu0 2
        %652 = vperm.xlu0 %651, %v480
        %v653 = vpop.permute.xlu0 %652
        %656 = vset.pattern.permute.xlu0 2
        %657 = vperm.xlu0 %656, %v481
        %v658 = vpop.permute.xlu0 %657
        %661 = vset.pattern.permute.xlu0 2
        %662 = vperm.xlu0 %661, %v482
        %v663 = vpop.permute.xlu0 %662
        %666 = vset.pattern.permute.xlu0 2
        %667 = vperm.xlu0 %666, %v483
        %v668 = vpop.permute.xlu0 %667
        %671 = vset.pattern.permute.xlu0 2
        %672 = vperm.xlu0 %671, %v484
        %v673 = vpop.permute.xlu0 %672
        %676 = vset.pattern.permute.xlu0 2
        %677 = vperm.xlu0 %676, %v485
        %v678 = vpop.permute.xlu0 %677
        %681 = vset.pattern.permute.xlu0 2
        %682 = vperm.xlu0 %681, %v486
        %v683 = vpop.permute.xlu0 %682
        %686 = vset.pattern.permute.xlu0 2
        %687 = vperm.xlu0 %686, %v487
        %v688 = vpop.permute.xlu0 %687
        %v698 = vunpack.c.l.b16 %v642
        %v699 = vunpack.c.l.b16 %v643
        %v700 = vunpack.c.l.b16 %v644
        %v701 = vunpack.c.l.b16 %v645
        %v702 = vunpack.c.l.b16 %v646
        %v703 = vunpack.c.l.b16 %v647
        %v704 = vunpack.c.l.b16 %v648
        %v705 = vunpack.c.l.b16 %v649
        %v706 = vpack.c.b16 %v699, %v698
        %v707 = vpack.c.b16 %v701, %v700
        %v708 = vpack.c.b16 %v703, %v702
        %v709 = vpack.c.b16 %v705, %v704
        %vm710 = vcmask 261120
        %v712 = vsel %vm710, %v706, 0
        %v715 = vsel %vm710, %v707, 0
        %v718 = vsel %vm710, %v708, 0
        %v721 = vsel %vm710, %v709, 0
        %723 = vmatprep.subr.bf16.mxu0 0
        %724 = vmatpush1.bf16.msra.mxu0 0
        %725 = vmatprep.subr.bf16.mxu0 0
        %726 = vmatpush1.bf16.msra.mxu0 0
        %727 = vmatprep.subr.bf16.mxu0 0
        %728 = vmatpush1.bf16.msra.mxu0 0
        %729 = vmatprep.subr.bf16.mxu0 0
        %730 = vmatpush1.bf16.msra.mxu0 0
        %731 = vmatprep.subr.bf16.mxu0 0
        %732 = vmatpush1.bf16.msra.mxu0 0
        %733 = vmatprep.subr.bf16.mxu0 0
        %734 = vmatpush1.bf16.msra.mxu0 0
        %735 = vmatprep.subr.bf16.mxu0 0
        %736 = vmatpush1.bf16.msra.mxu0 %v641
        %737 = vmatprep.subr.bf16.mxu0 0
        %738 = vmatpush1.bf16.msra.mxu0 %v640
        %739 = vmatprep.subr.bf16.mxu0 0
        %740 = vmatpush2.bf16.msra.mxu0 0
        %741 = vmatprep.subr.bf16.mxu0 0
        %742 = vmatpush2.bf16.msra.mxu0 0
        %743 = vmatprep.subr.bf16.mxu0 0
        %744 = vmatpush2.bf16.msra.mxu0 0
        %745 = vmatprep.subr.bf16.mxu0 0
        %746 = vmatpush2.bf16.msra.mxu0 0
        %747 = vmatprep.subr.bf16.mxu0 0
        %748 = vmatpush2.bf16.msra.mxu0 0
        %749 = vmatprep.subr.bf16.mxu0 0
        %750 = vmatpush2.bf16.msra.mxu0 0
        %751 = vmatprep.subr.bf16.mxu0 0
        %752 = vmatpush2.bf16.msra.mxu0 0
        %753 = vmatprep.subr.bf16.mxu0 0
        %754 = vmatpush2.bf16.msra.mxu0 0
        %755 = vmatprep.mubr.bf16.mxu0 0
        %756 = vmatmul.mubr.bf16.gmra.mxu0 %v712
        %v757 = vpop.f32.mrf.mxu0
        %v758 = vadd.f32 %v653, %v757
        %v759 = vpop.f32.mrf.mxu0
        %v760 = vpop.f32.mrf.mxu0
        %v761 = vadd.f32 %v658, %v760
        %v762 = vpop.f32.mrf.mxu0
        %763 = vmatprep.mubr.bf16.mxu0 0
        %764 = vmatmul.mubr.bf16.gmra.mxu0 %v715
        %v765 = vpop.f32.mrf.mxu0
        %v766 = vadd.f32 %v663, %v765
        %v767 = vpop.f32.mrf.mxu0
        %v768 = vpop.f32.mrf.mxu0
        %v769 = vadd.f32 %v668, %v768
        %v770 = vpop.f32.mrf.mxu0
        %771 = vmatprep.mubr.bf16.mxu0 0
        %772 = vmatmul.mubr.bf16.gmra.mxu0 %v718
        %v773 = vpop.f32.mrf.mxu0
        %v774 = vadd.f32 %v673, %v773
        %v775 = vpop.f32.mrf.mxu0
        %v776 = vpop.f32.mrf.mxu0
        %v777 = vadd.f32 %v678, %v776
        %v778 = vpop.f32.mrf.mxu0
        %779 = vmatprep.mubr.bf16.mxu0 0
        %780 = vmatmul.mubr.bf16.gmra.mxu0 %v721
        %v781 = vpop.f32.mrf.mxu0
        %v782 = vadd.f32 %v683, %v781
        %v783 = vpop.f32.mrf.mxu0
        %v784 = vpop.f32.mrf.mxu0
        %v785 = vadd.f32 %v688, %v784
        %v786 = vpop.f32.mrf.mxu0
        %787 = vdwg.mxu0
        %v788 = vmax.f32 %v758, 0.0
        %v789 = vmax.f32 %v761, 0.0
        %v790 = vmax.f32 %v766, 0.0
        %v791 = vmax.f32 %v769, 0.0
        %v792 = vmax.f32 %v774, 0.0
        %v793 = vmax.f32 %v777, 0.0
        %v794 = vmax.f32 %v782, 0.0
        %v795 = vmax.f32 %v785, 0.0
        %796 = vmax.xlane.f32.xlu0 %v788
        %v797 = vpop.xlane.xlu0 %796
        %798 = vmax.xlane.f32.xlu0 %v789
        %v799 = vpop.xlane.xlu0 %798
        %800 = vmax.xlane.f32.xlu0 %v790
        %v801 = vpop.xlane.xlu0 %800
        %802 = vmax.xlane.f32.xlu0 %v791
        %v803 = vpop.xlane.xlu0 %802
        %804 = vmax.xlane.f32.xlu0 %v792
        %v805 = vpop.xlane.xlu0 %804
        %806 = vmax.xlane.f32.xlu0 %v793
        %v807 = vpop.xlane.xlu0 %806
        %808 = vmax.xlane.f32.xlu0 %v794
        %v809 = vpop.xlane.xlu0 %808
        %810 = vmax.xlane.f32.xlu0 %v795
        %v811 = vpop.xlane.xlu0 %810
        %v812 = vld [vmem:[%s5] sm:$0xf]
        %v813 = vld [vmem:[%s5 + $0x4] sm:$0xf]
        %v814 = vld [vmem:[%s5 + $0x8] sm:$0xf]
        %v815 = vld [vmem:[%s5 + $0xc] sm:$0xf]
        %v816 = vld [vmem:[%s5 + $0x10] sm:$0xf]
        %v817 = vld [vmem:[%s5 + $0x14] sm:$0xf]
        %v818 = vld [vmem:[%s5 + $0x18] sm:$0xf]
        %v819 = vld [vmem:[%s5 + $0x1c] sm:$0xf]
        %v820 = vld [vmem:[%s5 + $0x20] sm:$0xf]
        %v821 = vld [vmem:[%s5 + $0x24] sm:$0xf]
        %v822 = vld [vmem:[%s5 + $0x28] sm:$0xf]
        %v823 = vld [vmem:[%s5 + $0x2c] sm:$0xf]
        %v824 = vld [vmem:[%s5 + $0x30] sm:$0xf]
        %v825 = vld [vmem:[%s5 + $0x34] sm:$0xf]
        %v826 = vld [vmem:[%s5 + $0x38] sm:$0xf]
        %v827 = vld [vmem:[%s5 + $0x3c] sm:$0xf]
        %v828 = vld [vmem:[%s6] sm:$0xf]
        %v829 = vld [vmem:[%s6 + $0x4] sm:$0xf]
        %v830 = vld [vmem:[%s6 + $0x8] sm:$0xf]
        %v831 = vld [vmem:[%s6 + $0xc] sm:$0xf]
        %v832 = vld [vmem:[%s6 + $0x10] sm:$0xf]
        %v833 = vld [vmem:[%s6 + $0x14] sm:$0xf]
        %v834 = vld [vmem:[%s6 + $0x18] sm:$0xf]
        %v835 = vld [vmem:[%s6 + $0x1c] sm:$0xf]
        %v836 = vld [vmem:[%s6 + $0x20] sm:$0xf]
        %v837 = vld [vmem:[%s6 + $0x24] sm:$0xf]
        %v838 = vld [vmem:[%s6 + $0x28] sm:$0xf]
        %v839 = vld [vmem:[%s6 + $0x2c] sm:$0xf]
        %v840 = vld [vmem:[%s6 + $0x30] sm:$0xf]
        %v841 = vld [vmem:[%s6 + $0x34] sm:$0xf]
        %v842 = vld [vmem:[%s6 + $0x38] sm:$0xf]
        %v843 = vld [vmem:[%s6 + $0x3c] sm:$0xf]
        %v844 = vpack.c.bf16 %v799, %v797
        %v845 = vpack.c.bf16 %v803, %v801
        %v846 = vpack.c.bf16 %v807, %v805
        %v847 = vpack.c.bf16 %v811, %v809
        %v848 = vld [vmem:[%s478] sm:$0xff]
        %v849 = vld [vmem:[%s478 + $0x8] sm:$0xff]
        %v850 = vld [vmem:[%s478 + $0x10] sm:$0xff]
        %v851 = vld [vmem:[%s478 + $0x18] sm:$0xff]
        %v852 = vld [vmem:[%s478 + $0x20] sm:$0xff]
        %v853 = vld [vmem:[%s478 + $0x28] sm:$0xff]
        %v854 = vld [vmem:[%s478 + $0x30] sm:$0xff]
        %v855 = vld [vmem:[%s478 + $0x38] sm:$0xff]
        %v856 = vld [vmem:[%s478 + $0x40] sm:$0xff]
        %v857 = vld [vmem:[%s478 + $0x48] sm:$0xff]
        %v858 = vld [vmem:[%s478 + $0x50] sm:$0xff]
        %v859 = vld [vmem:[%s478 + $0x58] sm:$0xff]
        %v860 = vld [vmem:[%s478 + $0x60] sm:$0xff]
        %v861 = vld [vmem:[%s478 + $0x68] sm:$0xff]
        %v862 = vld [vmem:[%s478 + $0x70] sm:$0xff]
        %v863 = vld [vmem:[%s478 + $0x78] sm:$0xff]
        %v880 = vunpack.c.l.b16 %v828
        %v881 = vunpack.c.l.b16 %v829
        %v882 = vunpack.c.l.b16 %v830
        %v883 = vunpack.c.l.b16 %v831
        %v884 = vunpack.c.l.b16 %v832
        %v885 = vunpack.c.l.b16 %v833
        %v886 = vunpack.c.l.b16 %v834
        %v887 = vunpack.c.l.b16 %v835
        %v888 = vunpack.c.l.b16 %v836
        %v889 = vunpack.c.l.b16 %v837
        %v890 = vunpack.c.l.b16 %v838
        %v891 = vunpack.c.l.b16 %v839
        %v892 = vunpack.c.l.b16 %v840
        %v893 = vunpack.c.l.b16 %v841
        %v894 = vunpack.c.l.b16 %v842
        %v895 = vunpack.c.l.b16 %v843
        %v896 = vpack.c.b16 %v881, %v880
        %v897 = vpack.c.b16 %v883, %v882
        %v898 = vpack.c.b16 %v885, %v884
        %v899 = vpack.c.b16 %v887, %v886
        %v900 = vpack.c.b16 %v889, %v888
        %v901 = vpack.c.b16 %v891, %v890
        %v902 = vpack.c.b16 %v893, %v892
        %v903 = vpack.c.b16 %v895, %v894
        %vm904 = vcmask 523264
        %v906 = vsel %vm904, %v896, 0
        %v909 = vsel %vm904, %v897, 0
        %v912 = vsel %vm904, %v898, 0
        %v915 = vsel %vm904, %v899, 0
        %v918 = vsel %vm904, %v900, 0
        %v921 = vsel %vm904, %v901, 0
        %v924 = vsel %vm904, %v902, 0
        %v927 = vsel %vm904, %v903, 0
        %929 = vmatprep.subr.bf16.mxu0 0
        %930 = vmatpush1.bf16.msra.mxu0 0
        %931 = vmatprep.subr.bf16.mxu0 0
        %932 = vmatpush1.bf16.msra.mxu0 0
        %933 = vmatprep.subr.bf16.mxu0 0
        %934 = vmatpush1.bf16.msra.mxu0 0
        %935 = vmatprep.subr.bf16.mxu0 0
        %936 = vmatpush1.bf16.msra.mxu0 0
        %937 = vmatprep.subr.bf16.mxu0 0
        %938 = vmatpush1.bf16.msra.mxu0 %v847
        %939 = vmatprep.subr.bf16.mxu0 0
        %940 = vmatpush1.bf16.msra.mxu0 %v846
        %941 = vmatprep.subr.bf16.mxu0 0
        %942 = vmatpush1.bf16.msra.mxu0 %v845
        %943 = vmatprep.subr.bf16.mxu0 0
        %944 = vmatpush1.bf16.msra.mxu0 %v844
        %945 = vmatprep.subr.bf16.mxu0 0
        %946 = vmatpush2.bf16.msra.mxu0 0
        %947 = vmatprep.subr.bf16.mxu0 0
        %948 = vmatpush2.bf16.msra.mxu0 0
        %949 = vmatprep.subr.bf16.mxu0 0
        %950 = vmatpush2.bf16.msra.mxu0 0
        %951 = vmatprep.subr.bf16.mxu0 0
        %952 = vmatpush2.bf16.msra.mxu0 0
        %953 = vmatprep.subr.bf16.mxu0 0
        %954 = vmatpush2.bf16.msra.mxu0 0
        %955 = vmatprep.subr.bf16.mxu0 0
        %956 = vmatpush2.bf16.msra.mxu0 0
        %957 = vmatprep.subr.bf16.mxu0 0
        %958 = vmatpush2.bf16.msra.mxu0 0
        %959 = vmatprep.subr.bf16.mxu0 0
        %960 = vmatpush2.bf16.msra.mxu0 0
        %961 = vmatprep.mubr.bf16.mxu0 0
        %962 = vmatmul.mubr.bf16.gmra.mxu0 %v906
        %v963 = vpop.f32.mrf.mxu0
        %v964 = vadd.f32 %v848, %v963
        %v965 = vpop.f32.mrf.mxu0
        %v966 = vpop.f32.mrf.mxu0
        %v967 = vadd.f32 %v849, %v966
        %v968 = vpop.f32.mrf.mxu0
        %969 = vmatprep.mubr.bf16.mxu0 0
        %970 = vmatmul.mubr.bf16.gmra.mxu0 %v909
        %v971 = vpop.f32.mrf.mxu0
        %v972 = vadd.f32 %v850, %v971
        %v973 = vpop.f32.mrf.mxu0
        %v974 = vpop.f32.mrf.mxu0
        %v975 = vadd.f32 %v851, %v974
        %v976 = vpop.f32.mrf.mxu0
        %977 = vmatprep.mubr.bf16.mxu0 0
        %978 = vmatmul.mubr.bf16.gmra.mxu0 %v912
        %v979 = vpop.f32.mrf.mxu0
        %v980 = vadd.f32 %v852, %v979
        %v981 = vpop.f32.mrf.mxu0
        %v982 = vpop.f32.mrf.mxu0
        %v983 = vadd.f32 %v853, %v982
        %v984 = vpop.f32.mrf.mxu0
        %985 = vmatprep.mubr.bf16.mxu0 0
        %986 = vmatmul.mubr.bf16.gmra.mxu0 %v915
        %v987 = vpop.f32.mrf.mxu0
        %v988 = vadd.f32 %v854, %v987
        %v989 = vpop.f32.mrf.mxu0
        %v990 = vpop.f32.mrf.mxu0
        %v991 = vadd.f32 %v855, %v990
        %v992 = vpop.f32.mrf.mxu0
        %993 = vmatprep.mubr.bf16.mxu0 0
        %994 = vmatmul.mubr.bf16.gmra.mxu0 %v918
        %v995 = vpop.f32.mrf.mxu0
        %v996 = vadd.f32 %v856, %v995
        %v997 = vpop.f32.mrf.mxu0
        %v998 = vpop.f32.mrf.mxu0
        %v999 = vadd.f32 %v857, %v998
        %v1000 = vpop.f32.mrf.mxu0
        %1001 = vmatprep.mubr.bf16.mxu0 0
        %1002 = vmatmul.mubr.bf16.gmra.mxu0 %v921
        %v1003 = vpop.f32.mrf.mxu0
        %v1004 = vadd.f32 %v858, %v1003
        %v1005 = vpop.f32.mrf.mxu0
        %v1006 = vpop.f32.mrf.mxu0
        %v1007 = vadd.f32 %v859, %v1006
        %v1008 = vpop.f32.mrf.mxu0
        %1009 = vmatprep.mubr.bf16.mxu0 0
        %1010 = vmatmul.mubr.bf16.gmra.mxu0 %v924
        %v1011 = vpop.f32.mrf.mxu0
        %v1012 = vadd.f32 %v860, %v1011
        %v1013 = vpop.f32.mrf.mxu0
        %v1014 = vpop.f32.mrf.mxu0
        %v1015 = vadd.f32 %v861, %v1014
        %v1016 = vpop.f32.mrf.mxu0
        %1017 = vmatprep.mubr.bf16.mxu0 0
        %1018 = vmatmul.mubr.bf16.gmra.mxu0 %v927
        %v1019 = vpop.f32.mrf.mxu0
        %v1020 = vadd.f32 %v862, %v1019
        %v1021 = vpop.f32.mrf.mxu0
        %v1022 = vpop.f32.mrf.mxu0
        %v1023 = vadd.f32 %v863, %v1022
        %v1024 = vpop.f32.mrf.mxu0
        %1025 = vdwg.mxu0
        %1027 = vset.pattern.permute.xlu0 0
        %1028 = vperm.xlu0 %1027, %v964
        %v1029 = vpop.permute.xlu0 %1028
        %1032 = vset.pattern.permute.xlu0 0
        %1033 = vperm.xlu0 %1032, %v967
        %v1034 = vpop.permute.xlu0 %1033
        %1037 = vset.pattern.permute.xlu0 0
        %1038 = vperm.xlu0 %1037, %v972
        %v1039 = vpop.permute.xlu0 %1038
        %1042 = vset.pattern.permute.xlu0 0
        %1043 = vperm.xlu0 %1042, %v975
        %v1044 = vpop.permute.xlu0 %1043
        %1047 = vset.pattern.permute.xlu0 0
        %1048 = vperm.xlu0 %1047, %v980
        %v1049 = vpop.permute.xlu0 %1048
        %1052 = vset.pattern.permute.xlu0 0
        %1053 = vperm.xlu0 %1052, %v983
        %v1054 = vpop.permute.xlu0 %1053
        %1057 = vset.pattern.permute.xlu0 0
        %1058 = vperm.xlu0 %1057, %v988
        %v1059 = vpop.permute.xlu0 %1058
        %1062 = vset.pattern.permute.xlu0 0
        %1063 = vperm.xlu0 %1062, %v991
        %v1064 = vpop.permute.xlu0 %1063
        %1067 = vset.pattern.permute.xlu0 0
        %1068 = vperm.xlu0 %1067, %v996
        %v1069 = vpop.permute.xlu0 %1068
        %1072 = vset.pattern.permute.xlu0 0
        %1073 = vperm.xlu0 %1072, %v999
        %v1074 = vpop.permute.xlu0 %1073
        %1077 = vset.pattern.permute.xlu0 0
        %1078 = vperm.xlu0 %1077, %v1004
        %v1079 = vpop.permute.xlu0 %1078
        %1082 = vset.pattern.permute.xlu0 0
        %1083 = vperm.xlu0 %1082, %v1007
        %v1084 = vpop.permute.xlu0 %1083
        %1087 = vset.pattern.permute.xlu0 0
        %1088 = vperm.xlu0 %1087, %v1012
        %v1089 = vpop.permute.xlu0 %1088
        %1092 = vset.pattern.permute.xlu0 0
        %1093 = vperm.xlu0 %1092, %v1015
        %v1094 = vpop.permute.xlu0 %1093
        %1097 = vset.pattern.permute.xlu0 0
        %1098 = vperm.xlu0 %1097, %v1020
        %v1099 = vpop.permute.xlu0 %1098
        %1102 = vset.pattern.permute.xlu0 0
        %1103 = vperm.xlu0 %1102, %v1023
        %v1104 = vpop.permute.xlu0 %1103
        %v1122 = vunpack.c.l.b16 %v812
        %v1123 = vunpack.c.l.b16 %v813
        %v1124 = vunpack.c.l.b16 %v814
        %v1125 = vunpack.c.l.b16 %v815
        %v1126 = vunpack.c.l.b16 %v816
        %v1127 = vunpack.c.l.b16 %v817
        %v1128 = vunpack.c.l.b16 %v818
        %v1129 = vunpack.c.l.b16 %v819
        %v1130 = vunpack.c.l.b16 %v820
        %v1131 = vunpack.c.l.b16 %v821
        %v1132 = vunpack.c.l.b16 %v822
        %v1133 = vunpack.c.l.b16 %v823
        %v1134 = vunpack.c.l.b16 %v824
        %v1135 = vunpack.c.l.b16 %v825
        %v1136 = vunpack.c.l.b16 %v826
        %v1137 = vunpack.c.l.b16 %v827
        %v1138 = vpack.c.b16 %v1123, %v1122
        %v1139 = vpack.c.b16 %v1125, %v1124
        %v1140 = vpack.c.b16 %v1127, %v1126
        %v1141 = vpack.c.b16 %v1129, %v1128
        %v1142 = vpack.c.b16 %v1131, %v1130
        %v1143 = vpack.c.b16 %v1133, %v1132
        %v1144 = vpack.c.b16 %v1135, %v1134
        %v1145 = vpack.c.b16 %v1137, %v1136
        %v1147 = vsel %vm710, %v1138, 0
        %v1150 = vsel %vm710, %v1139, 0
        %v1153 = vsel %vm710, %v1140, 0
        %v1156 = vsel %vm710, %v1141, 0
        %v1159 = vsel %vm710, %v1142, 0
        %v1162 = vsel %vm710, %v1143, 0
        %v1165 = vsel %vm710, %v1144, 0
        %v1168 = vsel %vm710, %v1145, 0
        %1170 = vmatprep.subr.bf16.mxu0 0
        %1171 = vmatpush1.bf16.msra.mxu0 0
        %1172 = vmatprep.subr.bf16.mxu0 0
        %1173 = vmatpush1.bf16.msra.mxu0 0
        %1174 = vmatprep.subr.bf16.mxu0 0
        %1175 = vmatpush1.bf16.msra.mxu0 0
        %1176 = vmatprep.subr.bf16.mxu0 0
        %1177 = vmatpush1.bf16.msra.mxu0 0
        %1178 = vmatprep.subr.bf16.mxu0 0
        %1179 = vmatpush1.bf16.msra.mxu0 0
        %1180 = vmatprep.subr.bf16.mxu0 0
        %1181 = vmatpush1.bf16.msra.mxu0 0
        %1182 = vmatprep.subr.bf16.mxu0 0
        %1183 = vmatpush1.bf16.msra.mxu0 %v641
        %1184 = vmatprep.subr.bf16.mxu0 0
        %1185 = vmatpush1.bf16.msra.mxu0 %v640
        %1186 = vmatprep.subr.bf16.mxu0 0
        %1187 = vmatpush2.bf16.msra.mxu0 0
        %1188 = vmatprep.subr.bf16.mxu0 0
        %1189 = vmatpush2.bf16.msra.mxu0 0
        %1190 = vmatprep.subr.bf16.mxu0 0
        %1191 = vmatpush2.bf16.msra.mxu0 0
        %1192 = vmatprep.subr.bf16.mxu0 0
        %1193 = vmatpush2.bf16.msra.mxu0 0
        %1194 = vmatprep.subr.bf16.mxu0 0
        %1195 = vmatpush2.bf16.msra.mxu0 0
        %1196 = vmatprep.subr.bf16.mxu0 0
        %1197 = vmatpush2.bf16.msra.mxu0 0
        %1198 = vmatprep.subr.bf16.mxu0 0
        %1199 = vmatpush2.bf16.msra.mxu0 0
        %1200 = vmatprep.subr.bf16.mxu0 0
        %1201 = vmatpush2.bf16.msra.mxu0 0
        %1202 = vmatprep.mubr.bf16.mxu0 0
        %1203 = vmatmul.mubr.bf16.gmra.mxu0 %v1147
        %v1204 = vpop.f32.mrf.mxu0
        %v1205 = vadd.f32 %v1029, %v1204
        %v1206 = vpop.f32.mrf.mxu0
        %v1207 = vpop.f32.mrf.mxu0
        %v1208 = vadd.f32 %v1034, %v1207
        %v1209 = vpop.f32.mrf.mxu0
        %1210 = vmatprep.mubr.bf16.mxu0 0
        %1211 = vmatmul.mubr.bf16.gmra.mxu0 %v1150
        %v1212 = vpop.f32.mrf.mxu0
        %v1213 = vadd.f32 %v1039, %v1212
        %v1214 = vpop.f32.mrf.mxu0
        %v1215 = vpop.f32.mrf.mxu0
        %v1216 = vadd.f32 %v1044, %v1215
        %v1217 = vpop.f32.mrf.mxu0
        %1218 = vmatprep.mubr.bf16.mxu0 0
        %1219 = vmatmul.mubr.bf16.gmra.mxu0 %v1153
        %v1220 = vpop.f32.mrf.mxu0
        %v1221 = vadd.f32 %v1049, %v1220
        %v1222 = vpop.f32.mrf.mxu0
        %v1223 = vpop.f32.mrf.mxu0
        %v1224 = vadd.f32 %v1054, %v1223
        %v1225 = vpop.f32.mrf.mxu0
        %1226 = vmatprep.mubr.bf16.mxu0 0
        %1227 = vmatmul.mubr.bf16.gmra.mxu0 %v1156
        %v1228 = vpop.f32.mrf.mxu0
        %v1229 = vadd.f32 %v1059, %v1228
        %v1230 = vpop.f32.mrf.mxu0
        %v1231 = vpop.f32.mrf.mxu0
        %v1232 = vadd.f32 %v1064, %v1231
        %v1233 = vpop.f32.mrf.mxu0
        %1234 = vmatprep.mubr.bf16.mxu0 0
        %1235 = vmatmul.mubr.bf16.gmra.mxu0 %v1159
        %v1236 = vpop.f32.mrf.mxu0
        %v1237 = vadd.f32 %v1069, %v1236
        %v1238 = vpop.f32.mrf.mxu0
        %v1239 = vpop.f32.mrf.mxu0
        %v1240 = vadd.f32 %v1074, %v1239
        %v1241 = vpop.f32.mrf.mxu0
        %1242 = vmatprep.mubr.bf16.mxu0 0
        %1243 = vmatmul.mubr.bf16.gmra.mxu0 %v1162
        %v1244 = vpop.f32.mrf.mxu0
        %v1245 = vadd.f32 %v1079, %v1244
        %v1246 = vpop.f32.mrf.mxu0
        %v1247 = vpop.f32.mrf.mxu0
        %v1248 = vadd.f32 %v1084, %v1247
        %v1249 = vpop.f32.mrf.mxu0
        %1250 = vmatprep.mubr.bf16.mxu0 0
        %1251 = vmatmul.mubr.bf16.gmra.mxu0 %v1165
        %v1252 = vpop.f32.mrf.mxu0
        %v1253 = vadd.f32 %v1089, %v1252
        %v1254 = vpop.f32.mrf.mxu0
        %v1255 = vpop.f32.mrf.mxu0
        %v1256 = vadd.f32 %v1094, %v1255
        %v1257 = vpop.f32.mrf.mxu0
        %1258 = vmatprep.mubr.bf16.mxu0 0
        %1259 = vmatmul.mubr.bf16.gmra.mxu0 %v1168
        %v1260 = vpop.f32.mrf.mxu0
        %v1261 = vadd.f32 %v1099, %v1260
        %v1262 = vpop.f32.mrf.mxu0
        %v1263 = vpop.f32.mrf.mxu0
        %v1264 = vadd.f32 %v1104, %v1263
        %v1265 = vpop.f32.mrf.mxu0
        %1266 = vdwg.mxu0
        %v1267 = vpack.c.bf16 %v1208, %v1205
        %v1268 = vpack.c.bf16 %v1216, %v1213
        %v1269 = vpack.c.bf16 %v1224, %v1221
        %v1270 = vpack.c.bf16 %v1232, %v1229
        %v1271 = vpack.c.bf16 %v1240, %v1237
        %v1272 = vpack.c.bf16 %v1248, %v1245
        %v1273 = vpack.c.bf16 %v1256, %v1253
        %v1274 = vpack.c.bf16 %v1264, %v1261
        %v1275 = vmax.bf16 %v1267, 0
        %v1276 = vmax.bf16 %v1268, 0
        %v1277 = vmax.bf16 %v1269, 0
        %v1278 = vmax.bf16 %v1270, 0
        %v1279 = vmax.bf16 %v1271, 0
        %v1280 = vmax.bf16 %v1272, 0
        %v1281 = vmax.bf16 %v1273, 0
        %v1282 = vmax.bf16 %v1274, 0
        %v1283 = vld [vmem:[%s7] sm:$0xf]
        %v1284 = vld [vmem:[%s7 + $0x4] sm:$0xf]
        %v1285 = vld [vmem:[%s7 + $0x8] sm:$0xf]
        %v1286 = vld [vmem:[%s7 + $0xc] sm:$0xf]
        %v1287 = vld [vmem:[%s7 + $0x10] sm:$0xf]
        %v1288 = vld [vmem:[%s7 + $0x14] sm:$0xf]
        %v1289 = vld [vmem:[%s7 + $0x18] sm:$0xf]
        %v1290 = vld [vmem:[%s7 + $0x1c] sm:$0xf]
        %v1299 = vunpack.c.l.b16 %v1283
        %v1300 = vunpack.c.l.b16 %v1284
        %v1301 = vunpack.c.l.b16 %v1285
        %v1302 = vunpack.c.l.b16 %v1286
        %v1303 = vunpack.c.l.b16 %v1287
        %v1304 = vunpack.c.l.b16 %v1288
        %v1305 = vunpack.c.l.b16 %v1289
        %v1306 = vunpack.c.l.b16 %v1290
        %v1307 = vpack.c.b16 %v1300, %v1299
        %v1308 = vpack.c.b16 %v1302, %v1301
        %v1309 = vpack.c.b16 %v1304, %v1303
        %v1310 = vpack.c.b16 %v1306, %v1305
        %1315 = vmatprep.subr.bf16.mxu0 0
        %1316 = vmatpush1.bf16.msra.mxu0 %v1282
        %1317 = vmatprep.subr.bf16.mxu0 0
        %1318 = vmatpush1.bf16.msra.mxu0 %v1281
        %1319 = vmatprep.subr.bf16.mxu0 0
        %1320 = vmatpush1.bf16.msra.mxu0 %v1280
        %1321 = vmatprep.subr.bf16.mxu0 0
        %1322 = vmatpush1.bf16.msra.mxu0 %v1279
        %1323 = vmatprep.subr.bf16.mxu0 0
        %1324 = vmatpush1.bf16.msra.mxu0 %v1278
        %1325 = vmatprep.subr.bf16.mxu0 0
        %1326 = vmatpush1.bf16.msra.mxu0 %v1277
        %1327 = vmatprep.subr.bf16.mxu0 0
        %1328 = vmatpush1.bf16.msra.mxu0 %v1276
        %1329 = vmatprep.subr.bf16.mxu0 0
        %1330 = vmatpush1.bf16.msra.mxu0 %v1275
        %1331 = vmatprep.subr.bf16.mxu0 0
        %1332 = vmatpush2.bf16.msra.mxu0 0
        %1333 = vmatprep.subr.bf16.mxu0 0
        %1334 = vmatpush2.bf16.msra.mxu0 0
        %1335 = vmatprep.subr.bf16.mxu0 0
        %1336 = vmatpush2.bf16.msra.mxu0 0
        %1337 = vmatprep.subr.bf16.mxu0 0
        %1338 = vmatpush2.bf16.msra.mxu0 0
        %1339 = vmatprep.subr.bf16.mxu0 0
        %1340 = vmatpush2.bf16.msra.mxu0 0
        %1341 = vmatprep.subr.bf16.mxu0 0
        %1342 = vmatpush2.bf16.msra.mxu0 0
        %1343 = vmatprep.subr.bf16.mxu0 0
        %1344 = vmatpush2.bf16.msra.mxu0 0
        %1345 = vmatprep.subr.bf16.mxu0 0
        %1346 = vmatpush2.bf16.msra.mxu0 0
        %1347 = vmatprep.mubr.bf16.mxu0 0
        %1348 = vmatmul.mubr.bf16.gmra.mxu0 %v1307
        %v1349 = vpop.f32.mrf.mxu0
        %v1350 = vadd.f32 0.0, %v1349
        %v1351 = vpop.f32.mrf.mxu0
        %v1352 = vpop.f32.mrf.mxu0
        %v1353 = vadd.f32 0.0, %v1352
        %v1354 = vpop.f32.mrf.mxu0
        %1355 = vmatprep.mubr.bf16.mxu0 0
        %1356 = vmatmul.mubr.bf16.gmra.mxu0 %v1308
        %v1357 = vpop.f32.mrf.mxu0
        %v1358 = vadd.f32 0.0, %v1357
        %v1359 = vpop.f32.mrf.mxu0
        %v1360 = vpop.f32.mrf.mxu0
        %v1361 = vadd.f32 0.0, %v1360
        %v1362 = vpop.f32.mrf.mxu0
        %1363 = vmatprep.mubr.bf16.mxu0 0
        %1364 = vmatmul.mubr.bf16.gmra.mxu0 %v1309
        %v1365 = vpop.f32.mrf.mxu0
        %v1366 = vadd.f32 0.0, %v1365
        %v1367 = vpop.f32.mrf.mxu0
        %v1368 = vpop.f32.mrf.mxu0
        %v1369 = vadd.f32 0.0, %v1368
        %v1370 = vpop.f32.mrf.mxu0
        %1371 = vmatprep.mubr.bf16.mxu0 0
        %1372 = vmatmul.mubr.bf16.gmra.mxu0 %v1310
        %v1373 = vpop.f32.mrf.mxu0
        %v1374 = vadd.f32 0.0, %v1373
        %v1375 = vpop.f32.mrf.mxu0
        %v1376 = vpop.f32.mrf.mxu0
        %v1377 = vadd.f32 0.0, %v1376
        %v1378 = vpop.f32.mrf.mxu0
        %1379 = vdwg.mxu0
        %v1380 = vpack.c.bf16 %v1353, %v1350
        %v1381 = vpack.c.bf16 %v1361, %v1358
        %v1382 = vpack.c.bf16 %v1369, %v1366
        %v1383 = vpack.c.bf16 %v1377, %v1374
        %v1384 = vpack.c.bf16 %v485, %v484
        %v1385 = vpack.c.bf16 %v487, %v486
        %1386 = vset.pattern.permute.xlu0 3
        %1387 = vperm.xlu0 %1386, %v549
        %v1388 = vpop.permute.xlu0 %1387
        %1390 = vset.pattern.permute.xlu0 3
        %1391 = vperm.xlu0 %1390, %v628
        %v1392 = vpop.permute.xlu0 %1391
        %1395 = vset.pattern.permute.xlu0 3
        %1396 = vperm.xlu0 %1395, %v1384
        %v1397 = vpop.permute.xlu0 %1396
        %1400 = vset.pattern.permute.xlu0 3
        %1401 = vperm.xlu0 %1400, %v1385
        %v1402 = vpop.permute.xlu0 %1401
        %v1404 = vadd.bf16 %v1380, %v1388
        %v1405 = vadd.bf16 %v1381, %v1392
        %v1406 = vadd.bf16 %v1382, %v1397
        %v1407 = vadd.bf16 %v1383, %v1402
        %v1408 = vmax.bf16 %v1404, 0
        %v1409 = vmax.bf16 %v1405, 0
        %v1410 = vmax.bf16 %v1406, 0
        %v1411 = vmax.bf16 %v1407, 0
        %v1412 = vld [vmem:[%s8] sm:$0xf]
        %v1413 = vld [vmem:[%s8 + $0x4] sm:$0xf]
        %v1414 = vld [vmem:[%s8 + $0x8] sm:$0xf]
        %v1415 = vld [vmem:[%s8 + $0xc] sm:$0xf]
        %v1420 = vunpack.c.l.b16 %v1412
        %v1421 = vunpack.c.l.b16 %v1413
        %v1422 = vunpack.c.l.b16 %v1414
        %v1423 = vunpack.c.l.b16 %v1415
        %v1424 = vpack.c.b16 %v1421, %v1420
        %v1425 = vpack.c.b16 %v1423, %v1422
        %v1427 = vsel %vm904, %v1424, 0
        %v1430 = vsel %vm904, %v1425, 0
        %1432 = vmatprep.subr.bf16.mxu0 0
        %1433 = vmatpush1.bf16.msra.mxu0 0
        %1434 = vmatprep.subr.bf16.mxu0 0
        %1435 = vmatpush1.bf16.msra.mxu0 0
        %1436 = vmatprep.subr.bf16.mxu0 0
        %1437 = vmatpush1.bf16.msra.mxu0 0
        %1438 = vmatprep.subr.bf16.mxu0 0
        %1439 = vmatpush1.bf16.msra.mxu0 0
        %1440 = vmatprep.subr.bf16.mxu0 0
        %1441 = vmatpush1.bf16.msra.mxu0 %v1411
        %1442 = vmatprep.subr.bf16.mxu0 0
        %1443 = vmatpush1.bf16.msra.mxu0 %v1410
        %1444 = vmatprep.subr.bf16.mxu0 0
        %1445 = vmatpush1.bf16.msra.mxu0 %v1409
        %1446 = vmatprep.subr.bf16.mxu0 0
        %1447 = vmatpush1.bf16.msra.mxu0 %v1408
        %1448 = vmatprep.subr.bf16.mxu0 0
        %1449 = vmatpush2.bf16.msra.mxu0 0
        %1450 = vmatprep.subr.bf16.mxu0 0
        %1451 = vmatpush2.bf16.msra.mxu0 0
        %1452 = vmatprep.subr.bf16.mxu0 0
        %1453 = vmatpush2.bf16.msra.mxu0 0
        %1454 = vmatprep.subr.bf16.mxu0 0
        %1455 = vmatpush2.bf16.msra.mxu0 0
        %1456 = vmatprep.subr.bf16.mxu0 0
        %1457 = vmatpush2.bf16.msra.mxu0 0
        %1458 = vmatprep.subr.bf16.mxu0 0
        %1459 = vmatpush2.bf16.msra.mxu0 0
        %1460 = vmatprep.subr.bf16.mxu0 0
        %1461 = vmatpush2.bf16.msra.mxu0 0
        %1462 = vmatprep.subr.bf16.mxu0 0
        %1463 = vmatpush2.bf16.msra.mxu0 0
        %1464 = vmatprep.mubr.bf16.mxu0 0
        %1465 = vmatmul.mubr.bf16.gmra.mxu0 %v1427
        %v1466 = vpop.f32.mrf.mxu0
        %v1467 = vadd.f32 0.0, %v1466
        %v1468 = vpop.f32.mrf.mxu0
        %v1469 = vpop.f32.mrf.mxu0
        %v1470 = vadd.f32 0.0, %v1469
        %v1471 = vpop.f32.mrf.mxu0
        %1472 = vmatprep.mubr.bf16.mxu0 0
        %1473 = vmatmul.mubr.bf16.gmra.mxu0 %v1430
        %v1474 = vpop.f32.mrf.mxu0
        %v1475 = vadd.f32 0.0, %v1474
        %v1476 = vpop.f32.mrf.mxu0
        %v1477 = vpop.f32.mrf.mxu0
        %v1478 = vadd.f32 0.0, %v1477
        %v1479 = vpop.f32.mrf.mxu0
        %1480 = vdwg.mxu0
        %v1481 = vpack.c.bf16 %v1470, %v1467
        %v1482 = vpack.c.bf16 %v1478, %v1475
        %1483 = vset.pattern.permute.xlu0 4
        %1484 = vperm.xlu0 %1483, %v549
        %v1485 = vpop.permute.xlu0 %1484
        %1487 = vset.pattern.permute.xlu0 4
        %1488 = vperm.xlu0 %1487, %v628
        %v1489 = vpop.permute.xlu0 %1488
        %v1491 = vadd.bf16 %v1481, %v1485
        %v1492 = vadd.bf16 %v1482, %v1489
        %v1493 = vmax.bf16 %v1491, 0
        %v1494 = vmax.bf16 %v1492, 0
        %v1495 = vld [vmem:[%s9] sm:$0xf]
        %v1496 = vld [vmem:[%s9 + $0x4] sm:$0xf]
        %v1497 = vld [vmem:[%s9 + $0x8] sm:$0xf]
        %v1498 = vld [vmem:[%s9 + $0xc] sm:$0xf]
        %v1503 = vunpack.c.l.b16 %v1495
        %v1504 = vunpack.c.l.b16 %v1496
        %v1505 = vunpack.c.l.b16 %v1497
        %v1506 = vunpack.c.l.b16 %v1498
        %v1507 = vpack.c.b16 %v1504, %v1503
        %v1508 = vpack.c.b16 %v1506, %v1505
        %v1510 = vsel %vm710, %v1507, 0
        %v1513 = vsel %vm710, %v1508, 0
        %1515 = vmatprep.subr.bf16.mxu0 0
        %1516 = vmatpush1.bf16.msra.mxu0 0
        %1517 = vmatprep.subr.bf16.mxu0 0
        %1518 = vmatpush1.bf16.msra.mxu0 0
        %1519 = vmatprep.subr.bf16.mxu0 0
        %1520 = vmatpush1.bf16.msra.mxu0 0
        %1521 = vmatprep.subr.bf16.mxu0 0
        %1522 = vmatpush1.bf16.msra.mxu0 0
        %1523 = vmatprep.subr.bf16.mxu0 0
        %1524 = vmatpush1.bf16.msra.mxu0 0
        %1525 = vmatprep.subr.bf16.mxu0 0
        %1526 = vmatpush1.bf16.msra.mxu0 0
        %1527 = vmatprep.subr.bf16.mxu0 0
        %1528 = vmatpush1.bf16.msra.mxu0 %v1494
        %1529 = vmatprep.subr.bf16.mxu0 0
        %1530 = vmatpush1.bf16.msra.mxu0 %v1493
        %1531 = vmatprep.subr.bf16.mxu0 0
        %1532 = vmatpush2.bf16.msra.mxu0 0
        %1533 = vmatprep.subr.bf16.mxu0 0
        %1534 = vmatpush2.bf16.msra.mxu0 0
        %1535 = vmatprep.subr.bf16.mxu0 0
        %1536 = vmatpush2.bf16.msra.mxu0 0
        %1537 = vmatprep.subr.bf16.mxu0 0
        %1538 = vmatpush2.bf16.msra.mxu0 0
        %1539 = vmatprep.subr.bf16.mxu0 0
        %1540 = vmatpush2.bf16.msra.mxu0 0
        %1541 = vmatprep.subr.bf16.mxu0 0
        %1542 = vmatpush2.bf16.msra.mxu0 0
        %1543 = vmatprep.subr.bf16.mxu0 0
        %1544 = vmatpush2.bf16.msra.mxu0 0
        %1545 = vmatprep.subr.bf16.mxu0 0
        %1546 = vmatpush2.bf16.msra.mxu0 0
        %1547 = vmatprep.mubr.bf16.mxu0 0
        %1548 = vmatmul.mubr.bf16.gmra.mxu0 %v1510
        %v1549 = vpop.f32.mrf.mxu0
        %v1550 = vadd.f32 0.0, %v1549
        %v1551 = vpop.f32.mrf.mxu0
        %v1552 = vpop.f32.mrf.mxu0
        %v1553 = vadd.f32 0.0, %v1552
        %v1554 = vpop.f32.mrf.mxu0
        %1555 = vmatprep.mubr.bf16.mxu0 0
        %1556 = vmatmul.mubr.bf16.gmra.mxu0 %v1513
        %v1557 = vpop.f32.mrf.mxu0
        %v1558 = vadd.f32 0.0, %v1557
        %v1559 = vpop.f32.mrf.mxu0
        %v1560 = vpop.f32.mrf.mxu0
        %v1561 = vadd.f32 0.0, %v1560
        %v1562 = vpop.f32.mrf.mxu0
        %1563 = vdwg.mxu0
        %v1564 = vpack.c.bf16 %v1553, %v1550
        %v1565 = vpack.c.bf16 %v1561, %v1558
        %1566 = vset.pattern.permute.xlu0 5
        %1567 = vperm.xlu0 %1566, %v549
        %v1568 = vpop.permute.xlu0 %1567
        %1570 = vset.pattern.permute.xlu0 5
        %1571 = vperm.xlu0 %1570, %v628
        %v1572 = vpop.permute.xlu0 %1571
        %v1574 = vadd.bf16 %v1564, %v1568
        %v1575 = vadd.bf16 %v1565, %v1572
        %v1576 = vmax.bf16 %v1574, 0
        %v1577 = vmax.bf16 %v1575, 0
        %v1578 = vld [vmem:[%s10] sm:$0xf]
        %1579 = vset.pattern.permute.xlu0 6
        %1580 = vperm.xlu0 %1579, %v480
        %v1581 = vpop.permute.xlu0 %1580
        %v1584 = vsel %vm710, %v1578, 0
        %1586 = vmatprep.subr.bf16.mxu0 0
        %1587 = vmatpush1.bf16.msra.mxu0 0
        %1588 = vmatprep.subr.bf16.mxu0 0
        %1589 = vmatpush1.bf16.msra.mxu0 0
        %1590 = vmatprep.subr.bf16.mxu0 0
        %1591 = vmatpush1.bf16.msra.mxu0 0
        %1592 = vmatprep.subr.bf16.mxu0 0
        %1593 = vmatpush1.bf16.msra.mxu0 0
        %1594 = vmatprep.subr.bf16.mxu0 0
        %1595 = vmatpush1.bf16.msra.mxu0 0
        %1596 = vmatprep.subr.bf16.mxu0 0
        %1597 = vmatpush1.bf16.msra.mxu0 0
        %1598 = vmatprep.subr.bf16.mxu0 0
        %1599 = vmatpush1.bf16.msra.mxu0 %v1577
        %1600 = vmatprep.subr.bf16.mxu0 0
        %1601 = vmatpush1.bf16.msra.mxu0 %v1576
        %1602 = vmatprep.subr.bf16.mxu0 0
        %1603 = vmatpush2.bf16.msra.mxu0 0
        %1604 = vmatprep.subr.bf16.mxu0 0
        %1605 = vmatpush2.bf16.msra.mxu0 0
        %1606 = vmatprep.subr.bf16.mxu0 0
        %1607 = vmatpush2.bf16.msra.mxu0 0
        %1608 = vmatprep.subr.bf16.mxu0 0
        %1609 = vmatpush2.bf16.msra.mxu0 0
        %1610 = vmatprep.subr.bf16.mxu0 0
        %1611 = vmatpush2.bf16.msra.mxu0 0
        %1612 = vmatprep.subr.bf16.mxu0 0
        %1613 = vmatpush2.bf16.msra.mxu0 0
        %1614 = vmatprep.subr.bf16.mxu0 0
        %1615 = vmatpush2.bf16.msra.mxu0 0
        %1616 = vmatprep.subr.bf16.mxu0 0
        %1617 = vmatpush2.bf16.msra.mxu0 0
        %1618 = vmatprep.mubr.bf16.mxu0 0
        %1619 = vmatmul.mubr.bf16.gmra.mxu0 %v1584
        %v1620 = vpop.f32.mrf.mxu0
        %v1621 = vadd.f32 %v1581, %v1620
        %v1622 = vpop.f32.mrf.mxu0
        %v1623 = vpop.f32.mrf.mxu0
        %v1624 = vpop.f32.mrf.mxu0
        %1625 = vdwg.mxu0
        %1626 = vst [vmem:[%s473] sm:$0xff] %v1621
        %s1627 = sand.u32 %s296, 1
        %s1628 = scalar_lea.sflag [#allocation4], %s1627
        %s1629 = sand.u32 %s296, 1
        %s1630 = smul.addr %s1629, 8
        %s1631 = scalar_lea.vmem [#allocation3], %s1630
        // Predicated region
        $region110: #{tpu_custom_call.1} parent=104 // pred_check
          %p1632 = pneg %p306
        $region111: #{tpu_custom_call.1} parent=104 // pred_check_branch
          %1634 = sbr.rel (%p1632) target = $region113
        $region112: #{tpu_custom_call.1} parent=104 // pred_region
          %s1636 = ssub.s32 128, 128
          %1637 = vsyncadd %s1628, %s1636
          %s1638 = smul.addr %s26, 128
          %s1639 = scalar_lea.hbm %s12, %s1638
          %s1641 = sshll.u32 %s1631, 4
          %s1642 = int_to_ptr.vmem [resolvable:$true] %s1641
          %1644 = dma.vmem_to_hbm [thread:$0]  %s1642, 128, %s1639, %s1628
        $region113: #{tpu_custom_call.1} parent=104 // pred_fallthru
          _
      $region105: #{tpu_custom_call.1} parent=5 // pred_fallthru
        _
      %p1645 = scmp.le.s32.totalorder 2, %s21
      // Predicated region
      $region114: #{tpu_custom_call.1} parent=5 // pred_check
        %p1646 = pneg %p1645
      $region115: #{tpu_custom_call.1} parent=5 // pred_check_branch
        %1648 = sbr.rel (%p1646) target = $region117
      $region116: #{tpu_custom_call.1} parent=5 // pred_region
        %s1649 = ssub.s32 %s21, 2
        // Predicated region
        $region118: #{tpu_custom_call.1} parent=116 // pred_check
          %p1650 = pneg %p312
        $region119: #{tpu_custom_call.1} parent=116 // pred_check_branch
          %1652 = sbr.rel (%p1650) target = $region121
        $region120: #{tpu_custom_call.1} parent=116 // pred_region
          %s1653 = sand.u32 %s297, 1
          %s1654 = scalar_lea.sflag [#allocation4], %s1653
          %s1655 = sand.u32 %s297, 1
          %s1656 = smul.addr %s1655, 8
          %s1657 = scalar_lea.vmem [#allocation3], %s1656
          %1658 = dma.done %s1654, 128
        $region121: #{tpu_custom_call.1} parent=116 // pred_fallthru
          _
      $region117: #{tpu_custom_call.1} parent=5 // pred_fallthru
        _
    $region6: #{tpu_custom_call.1} parent=1 // loop_footer
      %s25 = sadd.s32 1, %s21
    $region7: #{tpu_custom_call.1} parent=1 // loop_footer_branch
      %20 = sbr.rel target = $region3
    $region8: #{tpu_custom_call.1} parent=1 // loop_exit
      _
    %1659 = vsyncpa [#allocation4], 1
    %s1660 = scalar_lea.sflag [#allocation4], 1
    %1661 = vsyncpa %s1660, 1

</llo_original>
